<compile_context>
chip_gen: v5e
topology: v5e:2x2
jax: 0.10.0
libtpu: 0.0.40
codegen_flags: <defaults>
</compile_context>

<pallas_src>
import jax
import jax.numpy as jnp
from jax.experimental import pallas as pl
from jax.experimental.pallas import tpu as pltpu


def ncf_d_kernel(ratings_ref, gmf_item_ref, ncf_item_ref, user_ref, noise_ref,
                 w0_ref, b0_ref, w1_ref, b1_ref, w2_ref, b2_ref, w3_ref, b3_ref,
                 wa_ref, wb_ref, wc_ref, bncf_ref,
                 wf_gu_ref, wf_gn_ref, wf_ncf_ref,
                 scal_ref, out_ref):
    f32 = jnp.float32
    H = w0_ref.shape[0]                 # emb_dim // 2
    TB, M, D = gmf_item_ref.shape       # users-per-block, max_items, d_dim
    D2 = wc_ref.shape[1]                # 2 * d_dim

    u = user_ref[...]                   # (TB, E) f32
    nz = noise_ref[...]                 # (TB, E) f32
    u_gmf, u_ncf = u[:, :H], u[:, H:]
    n_gmf, n_ncf = nz[:, :H], nz[:, H:]

    # Per-user projections, batched over TB users: (TB, H) @ (H, D) on the MXU.
    gmf_u = jnp.dot(u_gmf, w0_ref[...], preferred_element_type=f32) + b0_ref[...]   # (TB, D)
    ncf_u = jnp.dot(u_ncf, w1_ref[...], preferred_element_type=f32) + b1_ref[...]   # (TB, D)
    gmf_n = jnp.dot(n_gmf, w2_ref[...], preferred_element_type=f32) + b2_ref[...]   # (TB, D)
    ncf_n = jnp.dot(n_ncf, w3_ref[...], preferred_element_type=f32) + b3_ref[...]   # (TB, D)

    # NCF user/noise contribution is constant over items -> one (TB, 2D) row.
    row_ncf = (jnp.dot(ncf_u, wa_ref[...], preferred_element_type=f32)
               + jnp.dot(ncf_n, wb_ref[...], preferred_element_type=f32)
               + bncf_ref[...])                                                      # (TB, 2D)

    # Item half of the NCF branch: one fat (TB*M, D) @ (D, 2D) matmul.
    ncf_item = ncf_item_ref[...]                                                     # (TB, M, D)
    item_proj = jnp.dot(ncf_item.reshape(TB * M, D), wc_ref[...],
                        preferred_element_type=f32)                                  # (TB*M, 2D)
    ncf_out = jnp.maximum(item_proj.reshape(TB, M, D2) + row_ncf[:, None, :], 0.0)   # (TB, M, 2D)

    # Final Linear(4D, 1), algebraically split per branch (no concatenation):
    #   gmf part: sum_d item[b,m,d] * (gmf_u[b,d]*wf_gu[d] + gmf_n[b,d]*wf_gn[d])
    gmf_w = gmf_u * wf_gu_ref[...] + gmf_n * wf_gn_ref[...]                          # (TB, D)
    gmf_item = gmf_item_ref[...].astype(f32)                                         # (TB, M, D)
    fin_gmf = jnp.sum(gmf_item * gmf_w[:, None, :], axis=-1)                         # (TB, M)
    fin_ncf = jnp.sum(ncf_out * wf_ncf_ref[...][None, :, :], axis=-1)                # (TB, M)

    p = scal_ref[0]        # SMEM scalar
    b_fin = scal_ref[1]    # SMEM scalar
    out_ref[...] = p * ratings_ref[...] + fin_gmf + fin_ncf + b_fin


def ncf_d_forward(ratings, item_ids, noise, init_user_emb, params, *,
                  tb=16, compute_dtype=jnp.float32):
    """Pallas wrapper reproducing NCF_d.forward."""
    # Embedding gathers stay in plain-JAX glue (data-dependent gather).
    gmf_item = params["gmf_emb"][item_ids].astype(compute_dtype)   # (B, M, D)
    ncf_item = params["ncf_emb"][item_ids].astype(compute_dtype)   # (B, M, D)

    B, M, D = gmf_item.shape
    E = init_user_emb.shape[-1]

    tb = max(1, min(tb, B))
    Bp = pl.cdiv(B, tb) * tb
    if Bp != B:
        pad = Bp - B
        padb = lambda x: jnp.pad(x, ((0, pad),) + ((0, 0),) * (x.ndim - 1))
        ratings_p, gmf_p, ncf_p, user_p, noise_p = map(
            padb, (ratings, gmf_item, ncf_item, init_user_emb, noise))
    else:
        ratings_p, gmf_p, ncf_p, user_p, noise_p = (
            ratings, gmf_item, ncf_item, init_user_emb, noise)

    # Split NCF first-layer weight into per-branch (D, 2D) blocks and the
    # final-layer weight into per-branch rows -> removes all in-kernel concats.
    w_ncf = params["w_ncf"]
    wa, wb = w_ncf[:D], w_ncf[D:2 * D]
    wc = w_ncf[2 * D:].astype(compute_dtype)
    w_fin = params["w_fin"]
    wf_gu, wf_gn, wf_ncf = w_fin[:, :D], w_fin[:, D:2 * D], w_fin[:, 2 * D:]

    # Scalars (p, final bias) go to SMEM.
    scal = jnp.stack([params["p"][0, 0], params["b_fin"][0, 0]]).astype(jnp.float32)

    def w_spec(arr):
        nd = arr.ndim
        return pl.BlockSpec(arr.shape, lambda b: (0,) * nd)

    grid_spec = pltpu.PrefetchScalarGridSpec(
        num_scalar_prefetch=0,
        grid=(Bp // tb,),
        in_specs=[
            pl.BlockSpec((tb, M),    lambda b: (b, 0)),      # ratings
            pl.BlockSpec((tb, M, D), lambda b: (b, 0, 0)),   # gmf item embs
            pl.BlockSpec((tb, M, D), lambda b: (b, 0, 0)),   # ncf item embs
            pl.BlockSpec((tb, E),    lambda b: (b, 0)),      # init_user_emb
            pl.BlockSpec((tb, E),    lambda b: (b, 0)),      # noise
            w_spec(params["w0"]), w_spec(params["b0"]),
            w_spec(params["w1"]), w_spec(params["b1"]),
            w_spec(params["w2"]), w_spec(params["b2"]),
            w_spec(params["w3"]), w_spec(params["b3"]),
            w_spec(wa), w_spec(wb), w_spec(wc), w_spec(params["b_ncf"]),
            w_spec(wf_gu), w_spec(wf_gn), w_spec(wf_ncf),
            pl.BlockSpec(memory_space=pltpu.MemorySpace.SMEM),   # [p, b_fin]
        ],
        out_specs=pl.BlockSpec((tb, M), lambda b: (b, 0)),
    )

    out = pl.pallas_call(
        ncf_d_kernel,
        out_shape=jax.ShapeDtypeStruct((Bp, M), jnp.float32),
        grid_spec=grid_spec,
        compiler_params=pltpu.CompilerParams(
            dimension_semantics=("parallel",)),   # batch blocks are independent
    )(ratings_p, gmf_p, ncf_p, user_p, noise_p,
      params["w0"], params["b0"], params["w1"], params["b1"],
      params["w2"], params["b2"], params["w3"], params["b3"],
      wa, wb, wc, params["b_ncf"],
      wf_gu, wf_gn, wf_ncf, scal)

    return out[:B] if Bp != B else out


def ncf_d_reference(ratings, item_ids, noise, init_user_emb, params):
    """Pure-JAX reference mirroring the PyTorch forward (all f32)."""
    gmf_item = params["gmf_emb"][item_ids]
    ncf_item = params["ncf_emb"][item_ids]
    E = init_user_emb.shape[-1]
    H = E // 2
    u_g, u_n = init_user_emb[:, :H], init_user_emb[:, H:]
    n_g, n_n = noise[:, :H], noise[:, H:]
    gmf_u = u_g @ params["w0"] + params["b0"]
    ncf_u = u_n @ params["w1"] + params["b1"]
    gmf_n = n_g @ params["w2"] + params["b2"]
    ncf_n = n_n @ params["w3"] + params["b3"]
    gmf_noise_out = gmf_item * gmf_n[:, None, :]
    gmf_user_out = gmf_item * gmf_u[:, None, :]
    gmf_denoise = jnp.concatenate([gmf_user_out, gmf_noise_out], axis=-1)
    ncf_in = jnp.concatenate(
        [jnp.broadcast_to(ncf_u[:, None, :], gmf_item.shape),
         jnp.broadcast_to(ncf_n[:, None, :], gmf_item.shape),
         ncf_item], axis=-1)
    ncf_out = jax.nn.relu(ncf_in @ params["w_ncf"] + params["b_ncf"])
    combine = jnp.concatenate([gmf_denoise, ncf_out], axis=-1)
    fin = jnp.sum(combine * params["w_fin"], axis=-1) + params["b_fin"][0, 0]
    return params["p"][0, 0] * ratings + fin


def make_params(key, num_items, emb_dim, d_dim):
    """Deterministic synthetic parameter init (kaiming-ish normals, zero biases)."""
    H = emb_dim // 2
    ks = jax.random.split(key, 8)
    std_lin = (2.0 / d_dim) ** 0.5          # kaiming_normal_ mode='fan_out'
    params = {
        "gmf_emb": jax.random.normal(ks[0], (num_items, d_dim), jnp.float32),
        "ncf_emb": jax.random.normal(ks[1], (num_items, d_dim), jnp.float32),
        # lin_layers[i]: Linear(H, d_dim); stored as (in, out)
        "w0": std_lin * jax.random.normal(ks[2], (H, d_dim), jnp.float32),
        "w1": std_lin * jax.random.normal(ks[3], (H, d_dim), jnp.float32),
        "w2": std_lin * jax.random.normal(ks[4], (H, d_dim), jnp.float32),
        "w3": std_lin * jax.random.normal(ks[5], (H, d_dim), jnp.float32),
        "b0": jnp.zeros((1, d_dim), jnp.float32),
        "b1": jnp.zeros((1, d_dim), jnp.float32),
        "b2": jnp.zeros((1, d_dim), jnp.float32),
        "b3": jnp.zeros((1, d_dim), jnp.float32),
        # ncf_layers: Linear(3D, 2D); stored as (in, out)
        "w_ncf": (1.0 / (3 * d_dim) ** 0.5)
                 * jax.random.normal(ks[6], (3 * d_dim, 2 * d_dim), jnp.float32),
        "b_ncf": jnp.zeros((1, 2 * d_dim), jnp.float32),
        # final_layer: Linear(4D, 1); stored as a (1, 4D) row vector
        "w_fin": (1.0 / (4 * d_dim) ** 0.5)
                 * jax.random.normal(ks[7], (1, 4 * d_dim), jnp.float32),
        "b_fin": jnp.zeros((1, 1), jnp.float32),
        "p": jnp.ones((1, 1), jnp.float32),   # nn.Parameter([1.0])
    }
    return params


if __name__ == "__main__":
    B = 32           # batch (users) -> 2 grid blocks of TB=16
    num_items = 64
    emb_dim = 32     # -> each split half is 16
    d_dim = 32       # args.d_dim
    max_items = 16   # args.max_items

    key = jax.random.PRNGKey(0)
    kp, kr, ki, kn, ku = jax.random.split(key, 5)

    params = make_params(kp, num_items, emb_dim, d_dim)
    ratings = jax.random.uniform(kr, (B, max_items), jnp.float32)
    item_ids = jax.random.randint(ki, (B, max_items), 0, num_items)
    noise = jax.random.normal(kn, (B, emb_dim), jnp.float32)
    init_user_emb = jax.random.normal(ku, (B, emb_dim), jnp.float32)

    ref = ncf_d_reference(ratings, item_ids, noise, init_user_emb, params)

    # f32 run: must match the reference tightly.
    out = ncf_d_forward(ratings, item_ids, noise, init_user_emb, params,
                        tb=16, compute_dtype=jnp.float32)
    out = jax.block_until_ready(out)
    assert out.shape == (B, max_items)
    assert jnp.allclose(out, ref, atol=1e-4, rtol=1e-4), "f32 mismatch vs reference"

    # bf16 item-embedding run (halves HBM traffic); looser tolerance.
    out_bf16 = ncf_d_forward(ratings, item_ids, noise, init_user_emb, params,
                             tb=16, compute_dtype=jnp.bfloat16)
    out_bf16 = jax.block_until_ready(out_bf16)
    assert jnp.allclose(out_bf16, ref, atol=5e-2, rtol=5e-2), "bf16 mismatch vs reference"

    print("KERNEL_OK")
</pallas_src>

<mosaic_0001>
module attributes {stable_mosaic.version = 11 : i64} {
  func.func @ncf_d_kernel(%arg0: i32, %arg1: memref<16x16xf32, #tpu.memory_space<vmem>>, %arg2: memref<16x16x32xf32, #tpu.memory_space<vmem>>, %arg3: memref<16x16x32xf32, #tpu.memory_space<vmem>>, %arg4: memref<16x32xf32, #tpu.memory_space<vmem>>, %arg5: memref<16x32xf32, #tpu.memory_space<vmem>>, %arg6: memref<16x32xf32, #tpu.memory_space<vmem>>, %arg7: memref<1x32xf32, #tpu.memory_space<vmem>>, %arg8: memref<16x32xf32, #tpu.memory_space<vmem>>, %arg9: memref<1x32xf32, #tpu.memory_space<vmem>>, %arg10: memref<16x32xf32, #tpu.memory_space<vmem>>, %arg11: memref<1x32xf32, #tpu.memory_space<vmem>>, %arg12: memref<16x32xf32, #tpu.memory_space<vmem>>, %arg13: memref<1x32xf32, #tpu.memory_space<vmem>>, %arg14: memref<32x64xf32, #tpu.memory_space<vmem>>, %arg15: memref<32x64xf32, #tpu.memory_space<vmem>>, %arg16: memref<32x64xf32, #tpu.memory_space<vmem>>, %arg17: memref<1x64xf32, #tpu.memory_space<vmem>>, %arg18: memref<1x32xf32, #tpu.memory_space<vmem>>, %arg19: memref<1x32xf32, #tpu.memory_space<vmem>>, %arg20: memref<1x64xf32, #tpu.memory_space<vmem>>, %arg21: memref<2xf32, #tpu.memory_space<smem>>, %arg22: memref<16x16xf32, #tpu.memory_space<vmem>>) attributes {dimension_semantics = [#tpu.dimension_semantics<parallel>], iteration_bounds = array<i64: 2>, scalar_prefetch = 0 : i64, scratch_operands = 0 : i64, tpu.core_type = #tpu.core_type<tc>, window_params = [{transform_indices = @transform_0, window_bounds = array<i64: 16, 16>}, {transform_indices = @transform_1, window_bounds = array<i64: 16, 16, 32>}, {transform_indices = @transform_2, window_bounds = array<i64: 16, 16, 32>}, {transform_indices = @transform_3, window_bounds = array<i64: 16, 32>}, {transform_indices = @transform_4, window_bounds = array<i64: 16, 32>}, {pipeline_mode = #tpu.pipeline_mode<synchronous>, transform_indices = @transform_5, window_bounds = array<i64: 16, 32>}, {pipeline_mode = #tpu.pipeline_mode<synchronous>, transform_indices = @transform_6, window_bounds = array<i64: 1, 32>}, {pipeline_mode = #tpu.pipeline_mode<synchronous>, transform_indices = @transform_7, window_bounds = array<i64: 16, 32>}, {pipeline_mode = #tpu.pipeline_mode<synchronous>, transform_indices = @transform_8, window_bounds = array<i64: 1, 32>}, {pipeline_mode = #tpu.pipeline_mode<synchronous>, transform_indices = @transform_9, window_bounds = array<i64: 16, 32>}, {pipeline_mode = #tpu.pipeline_mode<synchronous>, transform_indices = @transform_10, window_bounds = array<i64: 1, 32>}, {pipeline_mode = #tpu.pipeline_mode<synchronous>, transform_indices = @transform_11, window_bounds = array<i64: 16, 32>}, {pipeline_mode = #tpu.pipeline_mode<synchronous>, transform_indices = @transform_12, window_bounds = array<i64: 1, 32>}, {pipeline_mode = #tpu.pipeline_mode<synchronous>, transform_indices = @transform_13, window_bounds = array<i64: 32, 64>}, {pipeline_mode = #tpu.pipeline_mode<synchronous>, transform_indices = @transform_14, window_bounds = array<i64: 32, 64>}, {pipeline_mode = #tpu.pipeline_mode<synchronous>, transform_indices = @transform_15, window_bounds = array<i64: 32, 64>}, {pipeline_mode = #tpu.pipeline_mode<synchronous>, transform_indices = @transform_16, window_bounds = array<i64: 1, 64>}, {pipeline_mode = #tpu.pipeline_mode<synchronous>, transform_indices = @transform_17, window_bounds = array<i64: 1, 32>}, {pipeline_mode = #tpu.pipeline_mode<synchronous>, transform_indices = @transform_18, window_bounds = array<i64: 1, 32>}, {pipeline_mode = #tpu.pipeline_mode<synchronous>, transform_indices = @transform_19, window_bounds = array<i64: 1, 64>}, {transform_indices = @transform_20, window_bounds = array<i64: 2>}, {transform_indices = @transform_21, window_bounds = array<i64: 16, 16>}]} {
    %c0 = arith.constant 0 : index
    %c0_0 = arith.constant 0 : index
    %0 = vector.load %arg4[%c0, %c0_0] : memref<16x32xf32, #tpu.memory_space<vmem>>, vector<16x32xf32>
    %c0_1 = arith.constant 0 : index
    %c0_2 = arith.constant 0 : index
    %1 = vector.load %arg5[%c0_1, %c0_2] : memref<16x32xf32, #tpu.memory_space<vmem>>, vector<16x32xf32>
    %2 = vector.extract_strided_slice %0 {offsets = [0, 0], sizes = [16, 16], strides = [1, 1]} : vector<16x32xf32> to vector<16x16xf32>
    %3 = vector.extract_strided_slice %0 {offsets = [0, 16], sizes = [16, 16], strides = [1, 1]} : vector<16x32xf32> to vector<16x16xf32>
    %4 = vector.extract_strided_slice %1 {offsets = [0, 0], sizes = [16, 16], strides = [1, 1]} : vector<16x32xf32> to vector<16x16xf32>
    %5 = vector.extract_strided_slice %1 {offsets = [0, 16], sizes = [16, 16], strides = [1, 1]} : vector<16x32xf32> to vector<16x16xf32>
    %c0_3 = arith.constant 0 : index
    %c0_4 = arith.constant 0 : index
    %6 = vector.load %arg6[%c0_3, %c0_4] : memref<16x32xf32, #tpu.memory_space<vmem>>, vector<16x32xf32>
    %cst = arith.constant dense<0.000000e+00> : vector<16x32xf32>
    %7 = tpu.matmul %2, %6, %cst {dimension_numbers = #tpu.dot_dimension_numbers<[1], [0], [0], [1], [0, 0, 1, 1], [], []>} : vector<16x16xf32>, vector<16x32xf32>, vector<16x32xf32> -> vector<16x32xf32>
    %c0_5 = arith.constant 0 : index
    %c0_6 = arith.constant 0 : index
    %8 = vector.load %arg7[%c0_5, %c0_6] : memref<1x32xf32, #tpu.memory_space<vmem>>, vector<1x32xf32>
    %9 = vector.broadcast %8 : vector<1x32xf32> to vector<16x32xf32>
    %10 = arith.addf %7, %9 : vector<16x32xf32>
    %c0_7 = arith.constant 0 : index
    %c0_8 = arith.constant 0 : index
    %11 = vector.load %arg8[%c0_7, %c0_8] : memref<16x32xf32, #tpu.memory_space<vmem>>, vector<16x32xf32>
    %cst_9 = arith.constant dense<0.000000e+00> : vector<16x32xf32>
    %12 = tpu.matmul %3, %11, %cst_9 {dimension_numbers = #tpu.dot_dimension_numbers<[1], [0], [0], [1], [0, 0, 1, 1], [], []>} : vector<16x16xf32>, vector<16x32xf32>, vector<16x32xf32> -> vector<16x32xf32>
    %c0_10 = arith.constant 0 : index
    %c0_11 = arith.constant 0 : index
    %13 = vector.load %arg9[%c0_10, %c0_11] : memref<1x32xf32, #tpu.memory_space<vmem>>, vector<1x32xf32>
    %14 = vector.broadcast %13 : vector<1x32xf32> to vector<16x32xf32>
    %15 = arith.addf %12, %14 : vector<16x32xf32>
    %c0_12 = arith.constant 0 : index
    %c0_13 = arith.constant 0 : index
    %16 = vector.load %arg10[%c0_12, %c0_13] : memref<16x32xf32, #tpu.memory_space<vmem>>, vector<16x32xf32>
    %cst_14 = arith.constant dense<0.000000e+00> : vector<16x32xf32>
    %17 = tpu.matmul %4, %16, %cst_14 {dimension_numbers = #tpu.dot_dimension_numbers<[1], [0], [0], [1], [0, 0, 1, 1], [], []>} : vector<16x16xf32>, vector<16x32xf32>, vector<16x32xf32> -> vector<16x32xf32>
    %c0_15 = arith.constant 0 : index
    %c0_16 = arith.constant 0 : index
    %18 = vector.load %arg11[%c0_15, %c0_16] : memref<1x32xf32, #tpu.memory_space<vmem>>, vector<1x32xf32>
    %19 = vector.broadcast %18 : vector<1x32xf32> to vector<16x32xf32>
    %20 = arith.addf %17, %19 : vector<16x32xf32>
    %c0_17 = arith.constant 0 : index
    %c0_18 = arith.constant 0 : index
    %21 = vector.load %arg12[%c0_17, %c0_18] : memref<16x32xf32, #tpu.memory_space<vmem>>, vector<16x32xf32>
    %cst_19 = arith.constant dense<0.000000e+00> : vector<16x32xf32>
    %22 = tpu.matmul %5, %21, %cst_19 {dimension_numbers = #tpu.dot_dimension_numbers<[1], [0], [0], [1], [0, 0, 1, 1], [], []>} : vector<16x16xf32>, vector<16x32xf32>, vector<16x32xf32> -> vector<16x32xf32>
    %c0_20 = arith.constant 0 : index
    %c0_21 = arith.constant 0 : index
    %23 = vector.load %arg13[%c0_20, %c0_21] : memref<1x32xf32, #tpu.memory_space<vmem>>, vector<1x32xf32>
    %24 = vector.broadcast %23 : vector<1x32xf32> to vector<16x32xf32>
    %25 = arith.addf %22, %24 : vector<16x32xf32>
    %c0_22 = arith.constant 0 : index
    %c0_23 = arith.constant 0 : index
    %26 = vector.load %arg14[%c0_22, %c0_23] : memref<32x64xf32, #tpu.memory_space<vmem>>, vector<32x64xf32>
    %cst_24 = arith.constant dense<0.000000e+00> : vector<16x64xf32>
    %27 = tpu.matmul %15, %26, %cst_24 {dimension_numbers = #tpu.dot_dimension_numbers<[1], [0], [0], [1], [0, 0, 1, 1], [], []>} : vector<16x32xf32>, vector<32x64xf32>, vector<16x64xf32> -> vector<16x64xf32>
    %c0_25 = arith.constant 0 : index
    %c0_26 = arith.constant 0 : index
    %28 = vector.load %arg15[%c0_25, %c0_26] : memref<32x64xf32, #tpu.memory_space<vmem>>, vector<32x64xf32>
    %cst_27 = arith.constant dense<0.000000e+00> : vector<16x64xf32>
    %29 = tpu.matmul %25, %28, %cst_27 {dimension_numbers = #tpu.dot_dimension_numbers<[1], [0], [0], [1], [0, 0, 1, 1], [], []>} : vector<16x32xf32>, vector<32x64xf32>, vector<16x64xf32> -> vector<16x64xf32>
    %30 = arith.addf %27, %29 : vector<16x64xf32>
    %c0_28 = arith.constant 0 : index
    %c0_29 = arith.constant 0 : index
    %31 = vector.load %arg17[%c0_28, %c0_29] : memref<1x64xf32, #tpu.memory_space<vmem>>, vector<1x64xf32>
    %32 = vector.broadcast %31 : vector<1x64xf32> to vector<16x64xf32>
    %33 = arith.addf %30, %32 : vector<16x64xf32>
    %c0_30 = arith.constant 0 : index
    %c0_31 = arith.constant 0 : index
    %c0_32 = arith.constant 0 : index
    %34 = vector.load %arg3[%c0_30, %c0_31, %c0_32] : memref<16x16x32xf32, #tpu.memory_space<vmem>>, vector<16x16x32xf32>
    %35 = vector.shape_cast %34 : vector<16x16x32xf32> to vector<256x32xf32>
    %c0_33 = arith.constant 0 : index
    %c0_34 = arith.constant 0 : index
    %36 = vector.load %arg16[%c0_33, %c0_34] : memref<32x64xf32, #tpu.memory_space<vmem>>, vector<32x64xf32>
    %cst_35 = arith.constant dense<0.000000e+00> : vector<256x64xf32>
    %37 = tpu.matmul %35, %36, %cst_35 {dimension_numbers = #tpu.dot_dimension_numbers<[1], [0], [0], [1], [0, 0, 1, 1], [], []>} : vector<256x32xf32>, vector<32x64xf32>, vector<256x64xf32> -> vector<256x64xf32>
    %38 = vector.shape_cast %37 : vector<256x64xf32> to vector<16x16x64xf32>
    %39 = vector.shape_cast %33 : vector<16x64xf32> to vector<16x1x64xf32>
    %40 = vector.broadcast %39 : vector<16x1x64xf32> to vector<16x16x64xf32>
    %41 = arith.addf %38, %40 : vector<16x16x64xf32>
    %cst_36 = arith.constant 0.000000e+00 : f32
    %42 = vector.broadcast %cst_36 : f32 to vector<16x16x64xf32>
    %43 = arith.maximumf %41, %42 : vector<16x16x64xf32>
    %c0_37 = arith.constant 0 : index
    %c0_38 = arith.constant 0 : index
    %44 = vector.load %arg18[%c0_37, %c0_38] : memref<1x32xf32, #tpu.memory_space<vmem>>, vector<1x32xf32>
    %45 = vector.broadcast %44 : vector<1x32xf32> to vector<16x32xf32>
    %46 = arith.mulf %10, %45 : vector<16x32xf32>
    %c0_39 = arith.constant 0 : index
    %c0_40 = arith.constant 0 : index
    %47 = vector.load %arg19[%c0_39, %c0_40] : memref<1x32xf32, #tpu.memory_space<vmem>>, vector<1x32xf32>
    %48 = vector.broadcast %47 : vector<1x32xf32> to vector<16x32xf32>
    %49 = arith.mulf %20, %48 : vector<16x32xf32>
    %50 = arith.addf %46, %49 : vector<16x32xf32>
    %c0_41 = arith.constant 0 : index
    %c0_42 = arith.constant 0 : index
    %c0_43 = arith.constant 0 : index
    %51 = vector.load %arg2[%c0_41, %c0_42, %c0_43] : memref<16x16x32xf32, #tpu.memory_space<vmem>>, vector<16x16x32xf32>
    %52 = vector.shape_cast %50 : vector<16x32xf32> to vector<16x1x32xf32>
    %53 = vector.broadcast %52 : vector<16x1x32xf32> to vector<16x16x32xf32>
    %54 = arith.mulf %51, %53 : vector<16x16x32xf32>
    %cst_44 = arith.constant dense<0.000000e+00> : vector<16x16xf32>
    %55 = vector.multi_reduction <add>, %54, %cst_44 [2] : vector<16x16x32xf32> to vector<16x16xf32>
    %c0_45 = arith.constant 0 : index
    %c0_46 = arith.constant 0 : index
    %56 = vector.load %arg20[%c0_45, %c0_46] : memref<1x64xf32, #tpu.memory_space<vmem>>, vector<1x64xf32>
    %57 = vector.shape_cast %56 : vector<1x64xf32> to vector<1x1x64xf32>
    %58 = vector.broadcast %57 : vector<1x1x64xf32> to vector<16x16x64xf32>
    %59 = arith.mulf %43, %58 : vector<16x16x64xf32>
    %cst_47 = arith.constant dense<0.000000e+00> : vector<16x16xf32>
    %60 = vector.multi_reduction <add>, %59, %cst_47 [2] : vector<16x16x64xf32> to vector<16x16xf32>
    %c0_48 = arith.constant 0 : index
    %61 = memref.load %arg21[%c0_48] : memref<2xf32, #tpu.memory_space<smem>>
    %c1 = arith.constant 1 : index
    %62 = memref.load %arg21[%c1] : memref<2xf32, #tpu.memory_space<smem>>
    %c0_49 = arith.constant 0 : index
    %c0_50 = arith.constant 0 : index
    %63 = vector.load %arg1[%c0_49, %c0_50] : memref<16x16xf32, #tpu.memory_space<vmem>>, vector<16x16xf32>
    %64 = vector.broadcast %61 : f32 to vector<16x16xf32>
    %65 = arith.mulf %64, %63 : vector<16x16xf32>
    %66 = arith.addf %65, %55 : vector<16x16xf32>
    %67 = arith.addf %66, %60 : vector<16x16xf32>
    %68 = vector.broadcast %62 : f32 to vector<16x16xf32>
    %69 = arith.addf %67, %68 : vector<16x16xf32>
    %c0_51 = arith.constant 0 : index
    %c0_52 = arith.constant 0 : index
    %70 = vector.load %arg22[%c0_51, %c0_52] : memref<16x16xf32, #tpu.memory_space<vmem>>, vector<16x16xf32>
    tpu.vector_store %arg22[%c0_51, %c0_52], %69 {strides = array<i32>} : memref<16x16xf32, #tpu.memory_space<vmem>>, vector<16x16xf32>,
    return
  }
  func.func @transform_0(%arg0: i32) -> (i32, i32) {
    %c0_i32 = arith.constant 0 : i32
    %c0_i32_0 = arith.constant 0 : i32
    return %arg0, %c0_i32 : i32, i32
  }
  func.func @transform_1(%arg0: i32) -> (i32, i32, i32) {
    %c0_i32 = arith.constant 0 : i32
    %c0_i32_0 = arith.constant 0 : i32
    %c0_i32_1 = arith.constant 0 : i32
    return %arg0, %c0_i32, %c0_i32_0 : i32, i32, i32
  }
  func.func @transform_2(%arg0: i32) -> (i32, i32, i32) {
    %c0_i32 = arith.constant 0 : i32
    %c0_i32_0 = arith.constant 0 : i32
    %c0_i32_1 = arith.constant 0 : i32
    return %arg0, %c0_i32, %c0_i32_0 : i32, i32, i32
  }
  func.func @transform_3(%arg0: i32) -> (i32, i32) {
    %c0_i32 = arith.constant 0 : i32
    %c0_i32_0 = arith.constant 0 : i32
    return %arg0, %c0_i32 : i32, i32
  }
  func.func @transform_4(%arg0: i32) -> (i32, i32) {
    %c0_i32 = arith.constant 0 : i32
    %c0_i32_0 = arith.constant 0 : i32
    return %arg0, %c0_i32 : i32, i32
  }
  func.func @transform_5(%arg0: i32) -> (i32, i32) {
    %c0_i32 = arith.constant 0 : i32
    %c0_i32_0 = arith.constant 0 : i32
    %c0_i32_1 = arith.constant 0 : i32
    return %c0_i32, %c0_i32_0 : i32, i32
  }
  func.func @transform_6(%arg0: i32) -> (i32, i32) {
    %c0_i32 = arith.constant 0 : i32
    %c0_i32_0 = arith.constant 0 : i32
    %c0_i32_1 = arith.constant 0 : i32
    return %c0_i32, %c0_i32_0 : i32, i32
  }
  func.func @transform_7(%arg0: i32) -> (i32, i32) {
    %c0_i32 = arith.constant 0 : i32
    %c0_i32_0 = arith.constant 0 : i32
    %c0_i32_1 = arith.constant 0 : i32
    return %c0_i32, %c0_i32_0 : i32, i32
  }
  func.func @transform_8(%arg0: i32) -> (i32, i32) {
    %c0_i32 = arith.constant 0 : i32
    %c0_i32_0 = arith.constant 0 : i32
    %c0_i32_1 = arith.constant 0 : i32
    return %c0_i32, %c0_i32_0 : i32, i32
  }
  func.func @transform_9(%arg0: i32) -> (i32, i32) {
    %c0_i32 = arith.constant 0 : i32
    %c0_i32_0 = arith.constant 0 : i32
    %c0_i32_1 = arith.constant 0 : i32
    return %c0_i32, %c0_i32_0 : i32, i32
  }
  func.func @transform_10(%arg0: i32) -> (i32, i32) {
    %c0_i32 = arith.constant 0 : i32
    %c0_i32_0 = arith.constant 0 : i32
    %c0_i32_1 = arith.constant 0 : i32
    return %c0_i32, %c0_i32_0 : i32, i32
  }
  func.func @transform_11(%arg0: i32) -> (i32, i32) {
    %c0_i32 = arith.constant 0 : i32
    %c0_i32_0 = arith.constant 0 : i32
    %c0_i32_1 = arith.constant 0 : i32
    return %c0_i32, %c0_i32_0 : i32, i32
  }
  func.func @transform_12(%arg0: i32) -> (i32, i32) {
    %c0_i32 = arith.constant 0 : i32
    %c0_i32_0 = arith.constant 0 : i32
    %c0_i32_1 = arith.constant 0 : i32
    return %c0_i32, %c0_i32_0 : i32, i32
  }
  func.func @transform_13(%arg0: i32) -> (i32, i32) {
    %c0_i32 = arith.constant 0 : i32
    %c0_i32_0 = arith.constant 0 : i32
    %c0_i32_1 = arith.constant 0 : i32
    return %c0_i32, %c0_i32_0 : i32, i32
  }
  func.func @transform_14(%arg0: i32) -> (i32, i32) {
    %c0_i32 = arith.constant 0 : i32
    %c0_i32_0 = arith.constant 0 : i32
    %c0_i32_1 = arith.constant 0 : i32
    return %c0_i32, %c0_i32_0 : i32, i32
  }
  func.func @transform_15(%arg0: i32) -> (i32, i32) {
    %c0_i32 = arith.constant 0 : i32
    %c0_i32_0 = arith.constant 0 : i32
    %c0_i32_1 = arith.constant 0 : i32
    return %c0_i32, %c0_i32_0 : i32, i32
  }
  func.func @transform_16(%arg0: i32) -> (i32, i32) {
    %c0_i32 = arith.constant 0 : i32
    %c0_i32_0 = arith.constant 0 : i32
    %c0_i32_1 = arith.constant 0 : i32
    return %c0_i32, %c0_i32_0 : i32, i32
  }
  func.func @transform_17(%arg0: i32) -> (i32, i32) {
    %c0_i32 = arith.constant 0 : i32
    %c0_i32_0 = arith.constant 0 : i32
    %c0_i32_1 = arith.constant 0 : i32
    return %c0_i32, %c0_i32_0 : i32, i32
  }
  func.func @transform_18(%arg0: i32) -> (i32, i32) {
    %c0_i32 = arith.constant 0 : i32
    %c0_i32_0 = arith.constant 0 : i32
    %c0_i32_1 = arith.constant 0 : i32
    return %c0_i32, %c0_i32_0 : i32, i32
  }
  func.func @transform_19(%arg0: i32) -> (i32, i32) {
    %c0_i32 = arith.constant 0 : i32
    %c0_i32_0 = arith.constant 0 : i32
    %c0_i32_1 = arith.constant 0 : i32
    return %c0_i32, %c0_i32_0 : i32, i32
  }
  func.func @transform_20(%arg0: i32) -> i32 {
    %c0_i32 = arith.constant 0 : i32
    %c0_i32_0 = arith.constant 0 : i32
    return %c0_i32 : i32
  }
  func.func @transform_21(%arg0: i32) -> (i32, i32) {
    %c0_i32 = arith.constant 0 : i32
    %c0_i32_0 = arith.constant 0 : i32
    return %arg0, %c0_i32 : i32, i32
  }
}

</mosaic_0001>

<llo_original>
// kernel: tpu_custom_call.1
$region0: #{tpu_custom_call.1}
  #allocation0 [shape = 'u32[]', space=smem, size = 0x4, offset = 0x4, fixed_abs, tag = 'smem constant byte address 0x4 - core index']
  #allocation1 [shape = 'u32[72,128]{1,0:T(1,128)}', space=vmem, size = 0x9000, scoped, tag = 'internal scratch']
  %s0 = inlined_call_operand.vmem [shape: f32[32,16], index: 0, kind: input, shape index: {}]
  %s1 = inlined_call_operand.hbm [shape: f32[32,16,32], index: 1, kind: input, shape index: {}]
  %s2 = inlined_call_operand.hbm [shape: f32[32,16,32], index: 2, kind: input, shape index: {}]
  %s3 = inlined_call_operand.vmem [shape: f32[32,32], index: 3, kind: input, shape index: {}]
  %s4 = inlined_call_operand.hbm [shape: f32[32,32], index: 4, kind: input, shape index: {}]
  %s5 = inlined_call_operand.vmem [shape: f32[16,32], index: 5, kind: input, shape index: {}]
  %s6 = inlined_call_operand.vmem [shape: f32[1,32], index: 6, kind: input, shape index: {}]
  %s7 = inlined_call_operand.hbm [shape: f32[16,32], index: 7, kind: input, shape index: {}]
  %s8 = inlined_call_operand.vmem [shape: f32[1,32], index: 8, kind: input, shape index: {}]
  %s9 = inlined_call_operand.hbm [shape: f32[16,32], index: 9, kind: input, shape index: {}]
  %s10 = inlined_call_operand.vmem [shape: f32[1,32], index: 10, kind: input, shape index: {}]
  %s11 = inlined_call_operand.hbm [shape: f32[16,32], index: 11, kind: input, shape index: {}]
  %s12 = inlined_call_operand.vmem [shape: f32[1,32], index: 12, kind: input, shape index: {}]
  %s13 = inlined_call_operand.hbm [shape: f32[32,64], index: 13, kind: input, shape index: {}]
  %s14 = inlined_call_operand.hbm [shape: f32[32,64], index: 14, kind: input, shape index: {}]
  %s15 = inlined_call_operand.hbm [shape: f32[32,64], index: 15, kind: input, shape index: {}]
  %s16 = inlined_call_operand.vmem [shape: f32[1,64], index: 16, kind: input, shape index: {}]
  %s17 = inlined_call_operand.vmem [shape: f32[1,32], index: 17, kind: input, shape index: {}]
  %s18 = inlined_call_operand.vmem [shape: f32[1,32], index: 18, kind: input, shape index: {}]
  %s19 = inlined_call_operand.vmem [shape: f32[1,64], index: 19, kind: input, shape index: {}]
  %s20 = inlined_call_operand.vmem [shape: f32[2], index: 20, kind: input, shape index: {}]
  %s21 = inlined_call_operand.vmem [shape: f32[32,16], index: 21, kind: output, shape index: {}]
  %s22 = sld [smem:[#allocation0]]
  $region157: #{tpu_custom_call.1} parent=0
    _
  %s24 = ssub.s32 1, %s22
  %s25 = scalar_select 0, %s24, %s22
  $region1: #{tpu_custom_call.1} parent=0
    #allocation2 [shape = 'u8[262144]{0}', space=vmem, size = 0x40000, scoped, tag = 'input window, operand 1']
    #allocation3 [shape = 's32[2]{0}', space=sflag, size = 0x8, scoped, tag = 'scoped memory for tpu_custom_call.1']
    #allocation4 [shape = 's32[2]{0}', space=sflag, size = 0x8, scoped, tag = 'scoped memory for tpu_custom_call.1']
    #allocation5 [shape = 'u8[262144]{0}', space=vmem, size = 0x40000, scoped, tag = 'input window, operand 2']
    #allocation6 [shape = 's32[2]{0}', space=sflag, size = 0x8, scoped, tag = 'scoped memory for tpu_custom_call.1']
    #allocation7 [shape = 'u8[16384]{0}', space=vmem, size = 0x4000, scoped, tag = 'input window, operand 4']
    #allocation8 [shape = 'u8[8192]{0}', space=vmem, size = 0x2000, scoped, tag = 'input window, operand 7, single buffered']
    #allocation9 [shape = 's32[1]{0}', space=sflag, size = 0x4, scoped, tag = 'scoped memory for tpu_custom_call.1']
    #allocation10 [shape = 'u8[8192]{0}', space=vmem, size = 0x2000, scoped, tag = 'input window, operand 9, single buffered']
    #allocation11 [shape = 'u8[8192]{0}', space=vmem, size = 0x2000, scoped, tag = 'input window, operand 11, single buffered']
    #allocation12 [shape = 's32[1]{0}', space=sflag, size = 0x4, scoped, tag = 'scoped memory for tpu_custom_call.1']
    #allocation13 [shape = 'u8[16384]{0}', space=vmem, size = 0x4000, scoped, tag = 'input window, operand 13, single buffered']
    #allocation14 [shape = 'u8[16384]{0}', space=vmem, size = 0x4000, scoped, tag = 'input window, operand 14, single buffered']
    #allocation15 [shape = 's32[1]{0}', space=sflag, size = 0x4, scoped, tag = 'scoped memory for tpu_custom_call.1']
    #allocation16 [shape = 'u8[16384]{0}', space=vmem, size = 0x4000, scoped, tag = 'input window, operand 15, single buffered']
    #allocation17 [shape = 'u8[512]{0}', space=smem, size = 0x200, scoped, tag = 'input window, operand 20, single buffered']
    %26 = vsyncpa [#allocation3], 0
    %s27 = scalar_lea.sflag [#allocation3], 1
    %28 = vsyncpa %s27, 0
    %29 = vsyncpa [#allocation6], 0
    %s30 = scalar_lea.sflag [#allocation6], 1
    %31 = vsyncpa %s30, 0
    %32 = vsyncpa [#allocation9], 0
    %33 = vsyncpa [#allocation12], 0
    %34 = vsyncpa [#allocation15], 0
    %35 = vsyncpa [#allocation4], 0
    loop: start=0, step=1, limit=4
    $region2: #{tpu_custom_call.1} parent=1 // loop_pre_header
      _
    $region3: #{tpu_custom_call.1} parent=1 // loop_header
      %s37 = sphi 0, %s41
      %p38 = scmp.ge.s32.totalorder %s37, 4
      %s47 = sphi 0, %s49
      %s50 = sphi 0, %s47
      %s51 = sphi 0, %s50
      %s67 = sphi 0, %s51
      %s73 = sphi 0, %s75
      %s76 = sphi 0, %s73
      %s77 = sphi 0, %s76
      %s93 = sphi 0, %s77
      %s99 = sphi 0, %s101
      %s102 = sphi 0, %s99
      %s103 = sphi 0, %s102
      %s119 = sphi 0, %s103
      %s125 = sphi 0, %s127
      %s128 = sphi 0, %s125
      %s129 = sphi 0, %s128
      %s145 = sphi 0, %s129
      %s151 = sphi 0, %s153
      %s154 = sphi 0, %s151
      %s155 = sphi 0, %s154
      %s171 = sphi 0, %s155
      %s175 = sphi 0, %s175
      %s177 = sphi 0, %s175
      %s178 = sphi 0, %s177
      %s192 = sphi 0, %s178
      %s196 = sphi 0, %s196
      %s198 = sphi 0, %s196
      %s199 = sphi 0, %s198
      %s213 = sphi 0, %s199
      %s217 = sphi 0, %s217
      %s219 = sphi 0, %s217
      %s220 = sphi 0, %s219
      %s234 = sphi 0, %s220
      %s238 = sphi 0, %s238
      %s240 = sphi 0, %s238
      %s241 = sphi 0, %s240
      %s255 = sphi 0, %s241
      %s259 = sphi 0, %s259
      %s261 = sphi 0, %s259
      %s262 = sphi 0, %s261
      %s276 = sphi 0, %s262
      %s280 = sphi 0, %s280
      %s282 = sphi 0, %s280
      %s283 = sphi 0, %s282
      %s297 = sphi 0, %s283
      %s301 = sphi 0, %s301
      %s303 = sphi 0, %s301
      %s304 = sphi 0, %s303
      %s318 = sphi 0, %s304
      %s322 = sphi 0, %s322
      %s324 = sphi 0, %s322
      %s325 = sphi 0, %s324
      %s339 = sphi 0, %s325
      %s343 = sphi 0, %s343
      %s345 = sphi 0, %s343
      %s346 = sphi 0, %s345
      %s360 = sphi 0, %s346
      %s364 = sphi 0, %s364
      %s366 = sphi 0, %s364
      %s367 = sphi 0, %s366
      %s381 = sphi 0, %s367
      %s385 = sphi 0, %s385
      %s387 = sphi 0, %s385
      %s388 = sphi 0, %s387
      %s402 = sphi 0, %s388
      %s406 = sphi 0, %s406
      %s408 = sphi 0, %s406
      %s409 = sphi 0, %s408
      %s423 = sphi 0, %s409
      %s427 = sphi 0, %s427
      %s429 = sphi 0, %s427
      %s430 = sphi 0, %s429
      %s444 = sphi 0, %s430
      %s448 = sphi 0, %s448
      %s450 = sphi 0, %s448
      %s451 = sphi 0, %s450
      %s465 = sphi 0, %s451
      %s469 = sphi 0, %s469
      %s471 = sphi 0, %s469
      %s472 = sphi 0, %s471
      %s486 = sphi 0, %s472
      %s490 = sphi 0, %s490
      %s492 = sphi 0, %s490
      %s493 = sphi 0, %s492
      %s507 = sphi 0, %s493
      %s513 = sphi 0, %s515
      %s516 = sphi 0, %s513
      %s517 = sphi 0, %s516
      %s533 = sphi 0, %s517
    $region4: #{tpu_custom_call.1} parent=1 // loop_header_branch
      %40 = sbr.rel (%p38) target = $region8
    $region5: #{tpu_custom_call.1} parent=1 // loop_body
      %s42 = ssub.s32 %s37, 1
      %s43 = ssub.s32 %s37, 2
      %s44 = sadd.s32 %s37, 1
      %s45 = ssub.s32 %s37, %s44
      %p46 = scmp.eq.s32.totalorder %s45, 0
      %s48 = sadd.s32 %s47, 1
      %s49 = scalar_select %p46, %s47, %s48
      %p52 = pneg %p46
      %p53 = scmp.eq.s32.totalorder %s37, 1
      %p54 = por %p52, %p53
      %p55 = scmp.ne.s32.totalorder %s47, %s50
      %p56 = scmp.eq.s32.totalorder %s37, 0
      %p57 = por %p55, %p56
      %p58 = scmp.ne.s32.totalorder %s47, %s50
      %p59 = scmp.eq.s32.totalorder %s42, 1
      %p60 = por %p58, %p59
      %p61 = scmp.ne.s32.totalorder %s50, %s51
      %p62 = scmp.eq.s32.totalorder %s42, 0
      %p63 = por %p61, %p62
      %p64 = scmp.ne.s32.totalorder %s50, %s51
      %p65 = scmp.eq.s32.totalorder %s43, 1
      %p66 = por %p64, %p65
      %p68 = scmp.ne.s32.totalorder %s51, %s67
      %p69 = scmp.eq.s32.totalorder %s43, 0
      %p70 = por %p68, %p69
      %s71 = ssub.s32 %s37, %s44
      %p72 = scmp.eq.s32.totalorder %s71, 0
      %s74 = sadd.s32 %s73, 1
      %s75 = scalar_select %p72, %s73, %s74
      %p78 = pneg %p72
      %p79 = scmp.eq.s32.totalorder %s37, 1
      %p80 = por %p78, %p79
      %p81 = scmp.ne.s32.totalorder %s73, %s76
      %p82 = scmp.eq.s32.totalorder %s37, 0
      %p83 = por %p81, %p82
      %p84 = scmp.ne.s32.totalorder %s73, %s76
      %p85 = scmp.eq.s32.totalorder %s42, 1
      %p86 = por %p84, %p85
      %p87 = scmp.ne.s32.totalorder %s76, %s77
      %p88 = scmp.eq.s32.totalorder %s42, 0
      %p89 = por %p87, %p88
      %p90 = scmp.ne.s32.totalorder %s76, %s77
      %p91 = scmp.eq.s32.totalorder %s43, 1
      %p92 = por %p90, %p91
      %p94 = scmp.ne.s32.totalorder %s77, %s93
      %p95 = scmp.eq.s32.totalorder %s43, 0
      %p96 = por %p94, %p95
      %s97 = ssub.s32 %s37, %s44
      %p98 = scmp.eq.s32.totalorder %s97, 0
      %s100 = sadd.s32 %s99, 1
      %s101 = scalar_select %p98, %s99, %s100
      %p104 = pneg %p98
      %p105 = scmp.eq.s32.totalorder %s37, 1
      %p106 = por %p104, %p105
      %p107 = scmp.ne.s32.totalorder %s99, %s102
      %p108 = scmp.eq.s32.totalorder %s37, 0
      %p109 = por %p107, %p108
      %p110 = scmp.ne.s32.totalorder %s99, %s102
      %p111 = scmp.eq.s32.totalorder %s42, 1
      %p112 = por %p110, %p111
      %p113 = scmp.ne.s32.totalorder %s102, %s103
      %p114 = scmp.eq.s32.totalorder %s42, 0
      %p115 = por %p113, %p114
      %p116 = scmp.ne.s32.totalorder %s102, %s103
      %p117 = scmp.eq.s32.totalorder %s43, 1
      %p118 = por %p116, %p117
      %p120 = scmp.ne.s32.totalorder %s103, %s119
      %p121 = scmp.eq.s32.totalorder %s43, 0
      %p122 = por %p120, %p121
      %s123 = ssub.s32 %s37, %s44
      %p124 = scmp.eq.s32.totalorder %s123, 0
      %s126 = sadd.s32 %s125, 1
      %s127 = scalar_select %p124, %s125, %s126
      %p130 = pneg %p124
      %p131 = scmp.eq.s32.totalorder %s37, 1
      %p132 = por %p130, %p131
      %p133 = scmp.ne.s32.totalorder %s125, %s128
      %p134 = scmp.eq.s32.totalorder %s37, 0
      %p135 = por %p133, %p134
      %p136 = scmp.ne.s32.totalorder %s125, %s128
      %p137 = scmp.eq.s32.totalorder %s42, 1
      %p138 = por %p136, %p137
      %p139 = scmp.ne.s32.totalorder %s128, %s129
      %p140 = scmp.eq.s32.totalorder %s42, 0
      %p141 = por %p139, %p140
      %p142 = scmp.ne.s32.totalorder %s128, %s129
      %p143 = scmp.eq.s32.totalorder %s43, 1
      %p144 = por %p142, %p143
      %p146 = scmp.ne.s32.totalorder %s129, %s145
      %p147 = scmp.eq.s32.totalorder %s43, 0
      %p148 = por %p146, %p147
      %s149 = ssub.s32 %s37, %s44
      %p150 = scmp.eq.s32.totalorder %s149, 0
      %s152 = sadd.s32 %s151, 1
      %s153 = scalar_select %p150, %s151, %s152
      %p156 = pneg %p150
      %p157 = scmp.eq.s32.totalorder %s37, 1
      %p158 = por %p156, %p157
      %p159 = scmp.ne.s32.totalorder %s151, %s154
      %p160 = scmp.eq.s32.totalorder %s37, 0
      %p161 = por %p159, %p160
      %p162 = scmp.ne.s32.totalorder %s151, %s154
      %p163 = scmp.eq.s32.totalorder %s42, 1
      %p164 = por %p162, %p163
      %p165 = scmp.ne.s32.totalorder %s154, %s155
      %p166 = scmp.eq.s32.totalorder %s42, 0
      %p167 = por %p165, %p166
      %p168 = scmp.ne.s32.totalorder %s154, %s155
      %p169 = scmp.eq.s32.totalorder %s43, 1
      %p170 = por %p168, %p169
      %p172 = scmp.ne.s32.totalorder %s155, %s171
      %p173 = scmp.eq.s32.totalorder %s43, 0
      %p174 = por %p172, %p173
      %s176 = sadd.s32 %s175, 1
      %p179 = scmp.eq.s32.totalorder %s37, 1
      %p180 = scmp.ne.s32.totalorder %s175, %s177
      %p181 = scmp.eq.s32.totalorder %s37, 0
      %p182 = por %p180, %p181
      %p183 = scmp.ne.s32.totalorder %s175, %s177
      %p184 = scmp.eq.s32.totalorder %s42, 1
      %p185 = por %p183, %p184
      %p186 = scmp.ne.s32.totalorder %s177, %s178
      %p187 = scmp.eq.s32.totalorder %s42, 0
      %p188 = por %p186, %p187
      %p189 = scmp.ne.s32.totalorder %s177, %s178
      %p190 = scmp.eq.s32.totalorder %s43, 1
      %p191 = por %p189, %p190
      %p193 = scmp.ne.s32.totalorder %s178, %s192
      %p194 = scmp.eq.s32.totalorder %s43, 0
      %p195 = por %p193, %p194
      %s197 = sadd.s32 %s196, 1
      %p200 = scmp.eq.s32.totalorder %s37, 1
      %p201 = scmp.ne.s32.totalorder %s196, %s198
      %p202 = scmp.eq.s32.totalorder %s37, 0
      %p203 = por %p201, %p202
      %p204 = scmp.ne.s32.totalorder %s196, %s198
      %p205 = scmp.eq.s32.totalorder %s42, 1
      %p206 = por %p204, %p205
      %p207 = scmp.ne.s32.totalorder %s198, %s199
      %p208 = scmp.eq.s32.totalorder %s42, 0
      %p209 = por %p207, %p208
      %p210 = scmp.ne.s32.totalorder %s198, %s199
      %p211 = scmp.eq.s32.totalorder %s43, 1
      %p212 = por %p210, %p211
      %p214 = scmp.ne.s32.totalorder %s199, %s213
      %p215 = scmp.eq.s32.totalorder %s43, 0
      %p216 = por %p214, %p215
      %s218 = sadd.s32 %s217, 1
      %p221 = scmp.eq.s32.totalorder %s37, 1
      %p222 = scmp.ne.s32.totalorder %s217, %s219
      %p223 = scmp.eq.s32.totalorder %s37, 0
      %p224 = por %p222, %p223
      %p225 = scmp.ne.s32.totalorder %s217, %s219
      %p226 = scmp.eq.s32.totalorder %s42, 1
      %p227 = por %p225, %p226
      %p228 = scmp.ne.s32.totalorder %s219, %s220
      %p229 = scmp.eq.s32.totalorder %s42, 0
      %p230 = por %p228, %p229
      %p231 = scmp.ne.s32.totalorder %s219, %s220
      %p232 = scmp.eq.s32.totalorder %s43, 1
      %p233 = por %p231, %p232
      %p235 = scmp.ne.s32.totalorder %s220, %s234
      %p236 = scmp.eq.s32.totalorder %s43, 0
      %p237 = por %p235, %p236
      %s239 = sadd.s32 %s238, 1
      %p242 = scmp.eq.s32.totalorder %s37, 1
      %p243 = scmp.ne.s32.totalorder %s238, %s240
      %p244 = scmp.eq.s32.totalorder %s37, 0
      %p245 = por %p243, %p244
      %p246 = scmp.ne.s32.totalorder %s238, %s240
      %p247 = scmp.eq.s32.totalorder %s42, 1
      %p248 = por %p246, %p247
      %p249 = scmp.ne.s32.totalorder %s240, %s241
      %p250 = scmp.eq.s32.totalorder %s42, 0
      %p251 = por %p249, %p250
      %p252 = scmp.ne.s32.totalorder %s240, %s241
      %p253 = scmp.eq.s32.totalorder %s43, 1
      %p254 = por %p252, %p253
      %p256 = scmp.ne.s32.totalorder %s241, %s255
      %p257 = scmp.eq.s32.totalorder %s43, 0
      %p258 = por %p256, %p257
      %s260 = sadd.s32 %s259, 1
      %p263 = scmp.eq.s32.totalorder %s37, 1
      %p264 = scmp.ne.s32.totalorder %s259, %s261
      %p265 = scmp.eq.s32.totalorder %s37, 0
      %p266 = por %p264, %p265
      %p267 = scmp.ne.s32.totalorder %s259, %s261
      %p268 = scmp.eq.s32.totalorder %s42, 1
      %p269 = por %p267, %p268
      %p270 = scmp.ne.s32.totalorder %s261, %s262
      %p271 = scmp.eq.s32.totalorder %s42, 0
      %p272 = por %p270, %p271
      %p273 = scmp.ne.s32.totalorder %s261, %s262
      %p274 = scmp.eq.s32.totalorder %s43, 1
      %p275 = por %p273, %p274
      %p277 = scmp.ne.s32.totalorder %s262, %s276
      %p278 = scmp.eq.s32.totalorder %s43, 0
      %p279 = por %p277, %p278
      %s281 = sadd.s32 %s280, 1
      %p284 = scmp.eq.s32.totalorder %s37, 1
      %p285 = scmp.ne.s32.totalorder %s280, %s282
      %p286 = scmp.eq.s32.totalorder %s37, 0
      %p287 = por %p285, %p286
      %p288 = scmp.ne.s32.totalorder %s280, %s282
      %p289 = scmp.eq.s32.totalorder %s42, 1
      %p290 = por %p288, %p289
      %p291 = scmp.ne.s32.totalorder %s282, %s283
      %p292 = scmp.eq.s32.totalorder %s42, 0
      %p293 = por %p291, %p292
      %p294 = scmp.ne.s32.totalorder %s282, %s283
      %p295 = scmp.eq.s32.totalorder %s43, 1
      %p296 = por %p294, %p295
      %p298 = scmp.ne.s32.totalorder %s283, %s297
      %p299 = scmp.eq.s32.totalorder %s43, 0
      %p300 = por %p298, %p299
      %s302 = sadd.s32 %s301, 1
      %p305 = scmp.eq.s32.totalorder %s37, 1
      %p306 = scmp.ne.s32.totalorder %s301, %s303
      %p307 = scmp.eq.s32.totalorder %s37, 0
      %p308 = por %p306, %p307
      %p309 = scmp.ne.s32.totalorder %s301, %s303
      %p310 = scmp.eq.s32.totalorder %s42, 1
      %p311 = por %p309, %p310
      %p312 = scmp.ne.s32.totalorder %s303, %s304
      %p313 = scmp.eq.s32.totalorder %s42, 0
      %p314 = por %p312, %p313
      %p315 = scmp.ne.s32.totalorder %s303, %s304
      %p316 = scmp.eq.s32.totalorder %s43, 1
      %p317 = por %p315, %p316
      %p319 = scmp.ne.s32.totalorder %s304, %s318
      %p320 = scmp.eq.s32.totalorder %s43, 0
      %p321 = por %p319, %p320
      %s323 = sadd.s32 %s322, 1
      %p326 = scmp.eq.s32.totalorder %s37, 1
      %p327 = scmp.ne.s32.totalorder %s322, %s324
      %p328 = scmp.eq.s32.totalorder %s37, 0
      %p329 = por %p327, %p328
      %p330 = scmp.ne.s32.totalorder %s322, %s324
      %p331 = scmp.eq.s32.totalorder %s42, 1
      %p332 = por %p330, %p331
      %p333 = scmp.ne.s32.totalorder %s324, %s325
      %p334 = scmp.eq.s32.totalorder %s42, 0
      %p335 = por %p333, %p334
      %p336 = scmp.ne.s32.totalorder %s324, %s325
      %p337 = scmp.eq.s32.totalorder %s43, 1
      %p338 = por %p336, %p337
      %p340 = scmp.ne.s32.totalorder %s325, %s339
      %p341 = scmp.eq.s32.totalorder %s43, 0
      %p342 = por %p340, %p341
      %s344 = sadd.s32 %s343, 1
      %p347 = scmp.eq.s32.totalorder %s37, 1
      %p348 = scmp.ne.s32.totalorder %s343, %s345
      %p349 = scmp.eq.s32.totalorder %s37, 0
      %p350 = por %p348, %p349
      %p351 = scmp.ne.s32.totalorder %s343, %s345
      %p352 = scmp.eq.s32.totalorder %s42, 1
      %p353 = por %p351, %p352
      %p354 = scmp.ne.s32.totalorder %s345, %s346
      %p355 = scmp.eq.s32.totalorder %s42, 0
      %p356 = por %p354, %p355
      %p357 = scmp.ne.s32.totalorder %s345, %s346
      %p358 = scmp.eq.s32.totalorder %s43, 1
      %p359 = por %p357, %p358
      %p361 = scmp.ne.s32.totalorder %s346, %s360
      %p362 = scmp.eq.s32.totalorder %s43, 0
      %p363 = por %p361, %p362
      %s365 = sadd.s32 %s364, 1
      %p368 = scmp.eq.s32.totalorder %s37, 1
      %p369 = scmp.ne.s32.totalorder %s364, %s366
      %p370 = scmp.eq.s32.totalorder %s37, 0
      %p371 = por %p369, %p370
      %p372 = scmp.ne.s32.totalorder %s364, %s366
      %p373 = scmp.eq.s32.totalorder %s42, 1
      %p374 = por %p372, %p373
      %p375 = scmp.ne.s32.totalorder %s366, %s367
      %p376 = scmp.eq.s32.totalorder %s42, 0
      %p377 = por %p375, %p376
      %p378 = scmp.ne.s32.totalorder %s366, %s367
      %p379 = scmp.eq.s32.totalorder %s43, 1
      %p380 = por %p378, %p379
      %p382 = scmp.ne.s32.totalorder %s367, %s381
      %p383 = scmp.eq.s32.totalorder %s43, 0
      %p384 = por %p382, %p383
      %s386 = sadd.s32 %s385, 1
      %p389 = scmp.eq.s32.totalorder %s37, 1
      %p390 = scmp.ne.s32.totalorder %s385, %s387
      %p391 = scmp.eq.s32.totalorder %s37, 0
      %p392 = por %p390, %p391
      %p393 = scmp.ne.s32.totalorder %s385, %s387
      %p394 = scmp.eq.s32.totalorder %s42, 1
      %p395 = por %p393, %p394
      %p396 = scmp.ne.s32.totalorder %s387, %s388
      %p397 = scmp.eq.s32.totalorder %s42, 0
      %p398 = por %p396, %p397
      %p399 = scmp.ne.s32.totalorder %s387, %s388
      %p400 = scmp.eq.s32.totalorder %s43, 1
      %p401 = por %p399, %p400
      %p403 = scmp.ne.s32.totalorder %s388, %s402
      %p404 = scmp.eq.s32.totalorder %s43, 0
      %p405 = por %p403, %p404
      %s407 = sadd.s32 %s406, 1
      %p410 = scmp.eq.s32.totalorder %s37, 1
      %p411 = scmp.ne.s32.totalorder %s406, %s408
      %p412 = scmp.eq.s32.totalorder %s37, 0
      %p413 = por %p411, %p412
      %p414 = scmp.ne.s32.totalorder %s406, %s408
      %p415 = scmp.eq.s32.totalorder %s42, 1
      %p416 = por %p414, %p415
      %p417 = scmp.ne.s32.totalorder %s408, %s409
      %p418 = scmp.eq.s32.totalorder %s42, 0
      %p419 = por %p417, %p418
      %p420 = scmp.ne.s32.totalorder %s408, %s409
      %p421 = scmp.eq.s32.totalorder %s43, 1
      %p422 = por %p420, %p421
      %p424 = scmp.ne.s32.totalorder %s409, %s423
      %p425 = scmp.eq.s32.totalorder %s43, 0
      %p426 = por %p424, %p425
      %s428 = sadd.s32 %s427, 1
      %p431 = scmp.eq.s32.totalorder %s37, 1
      %p432 = scmp.ne.s32.totalorder %s427, %s429
      %p433 = scmp.eq.s32.totalorder %s37, 0
      %p434 = por %p432, %p433
      %p435 = scmp.ne.s32.totalorder %s427, %s429
      %p436 = scmp.eq.s32.totalorder %s42, 1
      %p437 = por %p435, %p436
      %p438 = scmp.ne.s32.totalorder %s429, %s430
      %p439 = scmp.eq.s32.totalorder %s42, 0
      %p440 = por %p438, %p439
      %p441 = scmp.ne.s32.totalorder %s429, %s430
      %p442 = scmp.eq.s32.totalorder %s43, 1
      %p443 = por %p441, %p442
      %p445 = scmp.ne.s32.totalorder %s430, %s444
      %p446 = scmp.eq.s32.totalorder %s43, 0
      %p447 = por %p445, %p446
      %s449 = sadd.s32 %s448, 1
      %p452 = scmp.eq.s32.totalorder %s37, 1
      %p453 = scmp.ne.s32.totalorder %s448, %s450
      %p454 = scmp.eq.s32.totalorder %s37, 0
      %p455 = por %p453, %p454
      %p456 = scmp.ne.s32.totalorder %s448, %s450
      %p457 = scmp.eq.s32.totalorder %s42, 1
      %p458 = por %p456, %p457
      %p459 = scmp.ne.s32.totalorder %s450, %s451
      %p460 = scmp.eq.s32.totalorder %s42, 0
      %p461 = por %p459, %p460
      %p462 = scmp.ne.s32.totalorder %s450, %s451
      %p463 = scmp.eq.s32.totalorder %s43, 1
      %p464 = por %p462, %p463
      %p466 = scmp.ne.s32.totalorder %s451, %s465
      %p467 = scmp.eq.s32.totalorder %s43, 0
      %p468 = por %p466, %p467
      %s470 = sadd.s32 %s469, 1
      %p473 = scmp.eq.s32.totalorder %s37, 1
      %p474 = scmp.ne.s32.totalorder %s469, %s471
      %p475 = scmp.eq.s32.totalorder %s37, 0
      %p476 = por %p474, %p475
      %p477 = scmp.ne.s32.totalorder %s469, %s471
      %p478 = scmp.eq.s32.totalorder %s42, 1
      %p479 = por %p477, %p478
      %p480 = scmp.ne.s32.totalorder %s471, %s472
      %p481 = scmp.eq.s32.totalorder %s42, 0
      %p482 = por %p480, %p481
      %p483 = scmp.ne.s32.totalorder %s471, %s472
      %p484 = scmp.eq.s32.totalorder %s43, 1
      %p485 = por %p483, %p484
      %p487 = scmp.ne.s32.totalorder %s472, %s486
      %p488 = scmp.eq.s32.totalorder %s43, 0
      %p489 = por %p487, %p488
      %s491 = sadd.s32 %s490, 1
      %p494 = scmp.eq.s32.totalorder %s37, 1
      %p495 = scmp.ne.s32.totalorder %s490, %s492
      %p496 = scmp.eq.s32.totalorder %s37, 0
      %p497 = por %p495, %p496
      %p498 = scmp.ne.s32.totalorder %s490, %s492
      %p499 = scmp.eq.s32.totalorder %s42, 1
      %p500 = por %p498, %p499
      %p501 = scmp.ne.s32.totalorder %s492, %s493
      %p502 = scmp.eq.s32.totalorder %s42, 0
      %p503 = por %p501, %p502
      %p504 = scmp.ne.s32.totalorder %s492, %s493
      %p505 = scmp.eq.s32.totalorder %s43, 1
      %p506 = por %p504, %p505
      %p508 = scmp.ne.s32.totalorder %s493, %s507
      %p509 = scmp.eq.s32.totalorder %s43, 0
      %p510 = por %p508, %p509
      %s511 = ssub.s32 %s37, %s44
      %p512 = scmp.eq.s32.totalorder %s511, 0
      %s514 = sadd.s32 %s513, 1
      %s515 = scalar_select %p512, %s513, %s514
      %p518 = pneg %p512
      %p519 = scmp.eq.s32.totalorder %s37, 1
      %p520 = por %p518, %p519
      %p521 = scmp.ne.s32.totalorder %s513, %s516
      %p522 = scmp.eq.s32.totalorder %s37, 0
      %p523 = por %p521, %p522
      %p524 = scmp.ne.s32.totalorder %s513, %s516
      %p525 = scmp.eq.s32.totalorder %s42, 1
      %p526 = por %p524, %p525
      %p527 = scmp.ne.s32.totalorder %s516, %s517
      %p528 = scmp.eq.s32.totalorder %s42, 0
      %p529 = por %p527, %p528
      %p530 = scmp.ne.s32.totalorder %s516, %s517
      %p531 = scmp.eq.s32.totalorder %s43, 1
      %p532 = por %p530, %p531
      %p534 = scmp.ne.s32.totalorder %s517, %s533
      %p535 = scmp.eq.s32.totalorder %s43, 0
      %p536 = por %p534, %p535
      %p537 = scmp.le.s32.totalorder 1, %s37
      %p538 = scmp.lt.s32.totalorder %s37, 3
      %p539 = pnand %p537, %p538
      %p540 = pneg %p539
      // Predicated region
      $region9: #{tpu_custom_call.1} parent=5 // pred_check
        _
      $region10: #{tpu_custom_call.1} parent=5 // pred_check_branch
        %542 = sbr.rel (%p539) target = $region12
      $region11: #{tpu_custom_call.1} parent=5 // pred_region
        %s543 = ssub.s32 %s37, 1
        // Predicated region
        $region13: #{tpu_custom_call.1} parent=11 // pred_check
          %p544 = pneg %p188
        $region14: #{tpu_custom_call.1} parent=11 // pred_check_branch
          %546 = sbr.rel (%p544) target = $region16
        $region15: #{tpu_custom_call.1} parent=11 // pred_region
          _
        $region16: #{tpu_custom_call.1} parent=11 // pred_fallthru
          _
        // Predicated region
        $region17: #{tpu_custom_call.1} parent=11 // pred_check
          %p547 = pneg %p209
        $region18: #{tpu_custom_call.1} parent=11 // pred_check_branch
          %549 = sbr.rel (%p547) target = $region20
        $region19: #{tpu_custom_call.1} parent=11 // pred_region
          _
        $region20: #{tpu_custom_call.1} parent=11 // pred_fallthru
          _
        // Predicated region
        $region21: #{tpu_custom_call.1} parent=11 // pred_check
          %p550 = pneg %p230
        $region22: #{tpu_custom_call.1} parent=11 // pred_check_branch
          %552 = sbr.rel (%p550) target = $region24
        $region23: #{tpu_custom_call.1} parent=11 // pred_region
          %554 = vsyncadd [#allocation9], 0
          %s555 = sshll.u32 %s7, 4
          %s556 = int_to_ptr.hbm [resolvable:$true] %s555
          %s557 = sshll.u32 [#allocation8], 4
          %s558 = int_to_ptr.vmem [resolvable:$true] %s557
          %563 = dma.hbm_to_vmem [thread:$0]  %s556, 256, %s558, [#allocation9], 128, 128, 8
        $region24: #{tpu_custom_call.1} parent=11 // pred_fallthru
          _
        // Predicated region
        $region25: #{tpu_custom_call.1} parent=11 // pred_check
          %p564 = pneg %p251
        $region26: #{tpu_custom_call.1} parent=11 // pred_check_branch
          %566 = sbr.rel (%p564) target = $region28
        $region27: #{tpu_custom_call.1} parent=11 // pred_region
          _
        $region28: #{tpu_custom_call.1} parent=11 // pred_fallthru
          _
        // Predicated region
        $region29: #{tpu_custom_call.1} parent=11 // pred_check
          %p567 = pneg %p272
        $region30: #{tpu_custom_call.1} parent=11 // pred_check_branch
          %569 = sbr.rel (%p567) target = $region32
        $region31: #{tpu_custom_call.1} parent=11 // pred_region
          %571 = vsyncadd [#allocation9], 0
          %s572 = sshll.u32 %s9, 4
          %s573 = int_to_ptr.hbm [resolvable:$true] %s572
          %s574 = sshll.u32 [#allocation10], 4
          %s575 = int_to_ptr.vmem [resolvable:$true] %s574
          %580 = dma.hbm_to_vmem [thread:$0]  %s573, 256, %s575, [#allocation9], 128, 128, 8
        $region32: #{tpu_custom_call.1} parent=11 // pred_fallthru
          _
        // Predicated region
        $region33: #{tpu_custom_call.1} parent=11 // pred_check
          %p581 = pneg %p293
        $region34: #{tpu_custom_call.1} parent=11 // pred_check_branch
          %583 = sbr.rel (%p581) target = $region36
        $region35: #{tpu_custom_call.1} parent=11 // pred_region
          _
        $region36: #{tpu_custom_call.1} parent=11 // pred_fallthru
          _
        // Predicated region
        $region37: #{tpu_custom_call.1} parent=11 // pred_check
          %p584 = pneg %p314
        $region38: #{tpu_custom_call.1} parent=11 // pred_check_branch
          %586 = sbr.rel (%p584) target = $region40
        $region39: #{tpu_custom_call.1} parent=11 // pred_region
          %588 = vsyncadd [#allocation12], 0
          %s589 = sshll.u32 %s11, 4
          %s590 = int_to_ptr.hbm [resolvable:$true] %s589
          %s591 = sshll.u32 [#allocation11], 4
          %s592 = int_to_ptr.vmem [resolvable:$true] %s591
          %597 = dma.hbm_to_vmem [thread:$0]  %s590, 256, %s592, [#allocation12], 128, 128, 8
        $region40: #{tpu_custom_call.1} parent=11 // pred_fallthru
          _
        // Predicated region
        $region41: #{tpu_custom_call.1} parent=11 // pred_check
          %p598 = pneg %p335
        $region42: #{tpu_custom_call.1} parent=11 // pred_check_branch
          %600 = sbr.rel (%p598) target = $region44
        $region43: #{tpu_custom_call.1} parent=11 // pred_region
          _
        $region44: #{tpu_custom_call.1} parent=11 // pred_fallthru
          _
        // Predicated region
        $region45: #{tpu_custom_call.1} parent=11 // pred_check
          %p601 = pneg %p356
        $region46: #{tpu_custom_call.1} parent=11 // pred_check_branch
          %603 = sbr.rel (%p601) target = $region48
        $region47: #{tpu_custom_call.1} parent=11 // pred_region
          %605 = vsyncadd [#allocation12], 0
          %s606 = sshll.u32 %s13, 4
          %s607 = int_to_ptr.hbm [resolvable:$true] %s606
          %s608 = sshll.u32 [#allocation13], 4
          %s609 = int_to_ptr.vmem [resolvable:$true] %s608
          %614 = dma.hbm_to_vmem [thread:$0]  %s607, 512, %s609, [#allocation12], 128, 128, 8
        $region48: #{tpu_custom_call.1} parent=11 // pred_fallthru
          _
        // Predicated region
        $region49: #{tpu_custom_call.1} parent=11 // pred_check
          %p615 = pneg %p377
        $region50: #{tpu_custom_call.1} parent=11 // pred_check_branch
          %617 = sbr.rel (%p615) target = $region52
        $region51: #{tpu_custom_call.1} parent=11 // pred_region
          %619 = vsyncadd [#allocation15], 0
          %s620 = sshll.u32 %s14, 4
          %s621 = int_to_ptr.hbm [resolvable:$true] %s620
          %s622 = sshll.u32 [#allocation14], 4
          %s623 = int_to_ptr.vmem [resolvable:$true] %s622
          %628 = dma.hbm_to_vmem [thread:$0]  %s621, 512, %s623, [#allocation15], 128, 128, 8
        $region52: #{tpu_custom_call.1} parent=11 // pred_fallthru
          _
        // Predicated region
        $region53: #{tpu_custom_call.1} parent=11 // pred_check
          %p629 = pneg %p398
        $region54: #{tpu_custom_call.1} parent=11 // pred_check_branch
          %631 = sbr.rel (%p629) target = $region56
        $region55: #{tpu_custom_call.1} parent=11 // pred_region
          %633 = vsyncadd [#allocation15], 0
          %s634 = sshll.u32 %s15, 4
          %s635 = int_to_ptr.hbm [resolvable:$true] %s634
          %s636 = sshll.u32 [#allocation16], 4
          %s637 = int_to_ptr.vmem [resolvable:$true] %s636
          %642 = dma.hbm_to_vmem [thread:$0]  %s635, 512, %s637, [#allocation15], 128, 128, 8
        $region56: #{tpu_custom_call.1} parent=11 // pred_fallthru
          _
        // Predicated region
        $region57: #{tpu_custom_call.1} parent=11 // pred_check
          %p643 = pneg %p419
        $region58: #{tpu_custom_call.1} parent=11 // pred_check_branch
          %645 = sbr.rel (%p643) target = $region60
        $region59: #{tpu_custom_call.1} parent=11 // pred_region
          _
        $region60: #{tpu_custom_call.1} parent=11 // pred_fallthru
          _
        // Predicated region
        $region61: #{tpu_custom_call.1} parent=11 // pred_check
          %p646 = pneg %p440
        $region62: #{tpu_custom_call.1} parent=11 // pred_check_branch
          %648 = sbr.rel (%p646) target = $region64
        $region63: #{tpu_custom_call.1} parent=11 // pred_region
          _
        $region64: #{tpu_custom_call.1} parent=11 // pred_fallthru
          _
        // Predicated region
        $region65: #{tpu_custom_call.1} parent=11 // pred_check
          %p649 = pneg %p461
        $region66: #{tpu_custom_call.1} parent=11 // pred_check_branch
          %651 = sbr.rel (%p649) target = $region68
        $region67: #{tpu_custom_call.1} parent=11 // pred_region
          _
        $region68: #{tpu_custom_call.1} parent=11 // pred_fallthru
          _
        // Predicated region
        $region69: #{tpu_custom_call.1} parent=11 // pred_check
          %p652 = pneg %p482
        $region70: #{tpu_custom_call.1} parent=11 // pred_check_branch
          %654 = sbr.rel (%p652) target = $region72
        $region71: #{tpu_custom_call.1} parent=11 // pred_region
          _
        $region72: #{tpu_custom_call.1} parent=11 // pred_fallthru
          _
        // Predicated region
        $region73: #{tpu_custom_call.1} parent=11 // pred_check
          %p655 = pneg %p503
        $region74: #{tpu_custom_call.1} parent=11 // pred_check_branch
          %657 = sbr.rel (%p655) target = $region76
        $region75: #{tpu_custom_call.1} parent=11 // pred_region
          %659 = vsyncadd [#allocation4], 0
          %s661 = sshll.u32 %s20, 4
          %s662 = int_to_ptr.vmem [resolvable:$true] %s661
          %664 = dma.vmem_to_smem %s662, 16, [#allocation17], [#allocation4]
        $region76: #{tpu_custom_call.1} parent=11 // pred_fallthru
          _
      $region12: #{tpu_custom_call.1} parent=5 // pred_fallthru
        _
      %p665 = scmp.lt.s32.totalorder %s37, 2
      // Predicated region
      $region77: #{tpu_custom_call.1} parent=5 // pred_check
        %p666 = pneg %p665
      $region78: #{tpu_custom_call.1} parent=5 // pred_check_branch
        %668 = sbr.rel (%p666) target = $region80
      $region79: #{tpu_custom_call.1} parent=5 // pred_region
        // Predicated region
        $region81: #{tpu_custom_call.1} parent=79 // pred_check
          %p669 = pneg %p57
        $region82: #{tpu_custom_call.1} parent=79 // pred_check_branch
          %671 = sbr.rel (%p669) target = $region84
        $region83: #{tpu_custom_call.1} parent=79 // pred_region
          %s672 = smul.u32 2, %s37
          %p673 = scmp.lt.s32.totalorder %s672, 3
          %s674 = scalar_select %p673, %s672, 3
          %s675 = smul.addr %s674, 8
          %s676 = scalar_lea.vmem %s0, %s675
          %s677 = smul.u32 2, %s37
        $region84: #{tpu_custom_call.1} parent=79 // pred_fallthru
          _
        // Predicated region
        $region85: #{tpu_custom_call.1} parent=79 // pred_check
          %p678 = pneg %p83
        $region86: #{tpu_custom_call.1} parent=79 // pred_check_branch
          %680 = sbr.rel (%p678) target = $region88
        $region87: #{tpu_custom_call.1} parent=79 // pred_region
          %s681 = sand.u32 %s73, 1
          %s682 = scalar_lea.sflag [#allocation3], %s681
          %s683 = sand.u32 %s73, 1
          %s684 = smul.addr %s683, 256
          %s685 = scalar_lea.vmem [#allocation2], %s684
          %s686 = smul.u32 16, %s37
          %688 = vsyncadd %s682, 0
          %s689 = smul.addr %s686, 2
          %s690 = smul.addr %s689, 8
          %s691 = scalar_lea.hbm %s1, %s690
          %s692 = sshll.u32 %s691, 4
          %s693 = int_to_ptr.hbm [resolvable:$true] %s692
          %s694 = sshll.u32 %s685, 4
          %s695 = int_to_ptr.vmem [resolvable:$true] %s694
          %700 = dma.hbm_to_vmem [thread:$0]  %s693, 4096, %s695, %s682, 128, 128, 8
        $region88: #{tpu_custom_call.1} parent=79 // pred_fallthru
          _
        // Predicated region
        $region89: #{tpu_custom_call.1} parent=79 // pred_check
          %p701 = pneg %p109
        $region90: #{tpu_custom_call.1} parent=79 // pred_check_branch
          %703 = sbr.rel (%p701) target = $region92
        $region91: #{tpu_custom_call.1} parent=79 // pred_region
          %s704 = sand.u32 %s37, 1
          %s705 = scalar_lea.sflag [#allocation6], %s704
          %s706 = sand.u32 %s99, 1
          %s707 = smul.addr %s706, 256
          %s708 = scalar_lea.vmem [#allocation5], %s707
          %s709 = smul.u32 16, %s37
          %711 = vsyncadd %s705, 0
          %s712 = smul.addr %s709, 2
          %s713 = smul.addr %s712, 8
          %s714 = scalar_lea.hbm %s2, %s713
          %s715 = sshll.u32 %s714, 4
          %s716 = int_to_ptr.hbm [resolvable:$true] %s715
          %s717 = sshll.u32 %s708, 4
          %s718 = int_to_ptr.vmem [resolvable:$true] %s717
          %723 = dma.hbm_to_vmem [thread:$0]  %s716, 4096, %s718, %s705, 128, 128, 8
        $region92: #{tpu_custom_call.1} parent=79 // pred_fallthru
          _
        // Predicated region
        $region93: #{tpu_custom_call.1} parent=79 // pred_check
          %p724 = pneg %p135
        $region94: #{tpu_custom_call.1} parent=79 // pred_check_branch
          %726 = sbr.rel (%p724) target = $region96
        $region95: #{tpu_custom_call.1} parent=79 // pred_region
          %s727 = smul.u32 2, %s37
          %p728 = scmp.lt.s32.totalorder %s727, 3
          %s729 = scalar_select %p728, %s727, 3
          %s730 = smul.addr %s729, 8
          %s731 = scalar_lea.vmem %s3, %s730
          %s732 = smul.u32 2, %s37
        $region96: #{tpu_custom_call.1} parent=79 // pred_fallthru
          _
        // Predicated region
        $region97: #{tpu_custom_call.1} parent=79 // pred_check
          %p733 = pneg %p161
        $region98: #{tpu_custom_call.1} parent=79 // pred_check_branch
          %735 = sbr.rel (%p733) target = $region100
        $region99: #{tpu_custom_call.1} parent=79 // pred_region
          %s736 = sand.u32 %s37, 1
          %s737 = scalar_lea.sflag [#allocation6], %s736
          %s738 = sand.u32 %s151, 1
          %s739 = smul.addr %s738, 16
          %s740 = scalar_lea.vmem [#allocation7], %s739
          %s741 = smul.u32 2, %s37
          %743 = vsyncadd %s737, 0
          %s744 = smul.addr %s741, 8
          %s745 = scalar_lea.hbm %s4, %s744
          %s746 = sshll.u32 %s745, 4
          %s747 = int_to_ptr.hbm [resolvable:$true] %s746
          %s748 = sshll.u32 %s740, 4
          %s749 = int_to_ptr.vmem [resolvable:$true] %s748
          %754 = dma.hbm_to_vmem [thread:$0]  %s747, 256, %s749, %s737, 128, 128, 8
        $region100: #{tpu_custom_call.1} parent=79 // pred_fallthru
          _
      $region80: #{tpu_custom_call.1} parent=5 // pred_fallthru
        _
      %p755 = scmp.le.s32.totalorder 1, %s37
      %p756 = scmp.lt.s32.totalorder %s37, 3
      %p757 = pnand %p755, %p756
      %p758 = pneg %p757
      // Predicated region
      $region101: #{tpu_custom_call.1} parent=5 // pred_check
        _
      $region102: #{tpu_custom_call.1} parent=5 // pred_check_branch
        %760 = sbr.rel (%p757) target = $region104
      $region103: #{tpu_custom_call.1} parent=5 // pred_region
        %s761 = ssub.s32 %s37, 1
        %s762 = sand.u32 %s76, 1
        %s763 = scalar_lea.sflag [#allocation3], %s762
        %s764 = sand.u32 %s76, 1
        %s765 = smul.addr %s764, 256
        %s766 = scalar_lea.vmem [#allocation2], %s765
        // Predicated region
        $region105: #{tpu_custom_call.1} parent=103 // pred_check
          %p767 = pneg %p89
        $region106: #{tpu_custom_call.1} parent=103 // pred_check_branch
          %769 = sbr.rel (%p767) target = $region108
        $region107: #{tpu_custom_call.1} parent=103 // pred_region
          %771 = dma.done %s763, 4096
        $region108: #{tpu_custom_call.1} parent=103 // pred_fallthru
          _
        %s772 = sand.u32 %s42, 1
        %s773 = scalar_lea.sflag [#allocation6], %s772
        %s774 = sand.u32 %s102, 1
        %s775 = smul.addr %s774, 256
        %s776 = scalar_lea.vmem [#allocation5], %s775
        // Predicated region
        $region109: #{tpu_custom_call.1} parent=103 // pred_check
          %p777 = pneg %p115
        $region110: #{tpu_custom_call.1} parent=103 // pred_check_branch
          %779 = sbr.rel (%p777) target = $region112
        $region111: #{tpu_custom_call.1} parent=103 // pred_region
          %781 = dma.done %s773, 4096
        $region112: #{tpu_custom_call.1} parent=103 // pred_fallthru
          _
        %s782 = sand.u32 %s42, 1
        %s783 = scalar_lea.sflag [#allocation6], %s782
        %s784 = sand.u32 %s154, 1
        %s785 = smul.addr %s784, 16
        %s786 = scalar_lea.vmem [#allocation7], %s785
        // Predicated region
        $region113: #{tpu_custom_call.1} parent=103 // pred_check
          %p787 = pneg %p167
        $region114: #{tpu_custom_call.1} parent=103 // pred_check_branch
          %789 = sbr.rel (%p787) target = $region116
        $region115: #{tpu_custom_call.1} parent=103 // pred_region
          %791 = dma.done %s783, 256
        $region116: #{tpu_custom_call.1} parent=103 // pred_fallthru
          _
        // Predicated region
        $region117: #{tpu_custom_call.1} parent=103 // pred_check
          %p792 = pneg %p230
        $region118: #{tpu_custom_call.1} parent=103 // pred_check_branch
          %794 = sbr.rel (%p792) target = $region120
        $region119: #{tpu_custom_call.1} parent=103 // pred_region
          %796 = dma.done [#allocation9], 256
        $region120: #{tpu_custom_call.1} parent=103 // pred_fallthru
          _
        // Predicated region
        $region121: #{tpu_custom_call.1} parent=103 // pred_check
          %p797 = pneg %p272
        $region122: #{tpu_custom_call.1} parent=103 // pred_check_branch
          %799 = sbr.rel (%p797) target = $region124
        $region123: #{tpu_custom_call.1} parent=103 // pred_region
          %801 = dma.done [#allocation9], 256
        $region124: #{tpu_custom_call.1} parent=103 // pred_fallthru
          _
        // Predicated region
        $region125: #{tpu_custom_call.1} parent=103 // pred_check
          %p802 = pneg %p314
        $region126: #{tpu_custom_call.1} parent=103 // pred_check_branch
          %804 = sbr.rel (%p802) target = $region128
        $region127: #{tpu_custom_call.1} parent=103 // pred_region
          %806 = dma.done [#allocation12], 256
        $region128: #{tpu_custom_call.1} parent=103 // pred_fallthru
          _
        // Predicated region
        $region129: #{tpu_custom_call.1} parent=103 // pred_check
          %p807 = pneg %p356
        $region130: #{tpu_custom_call.1} parent=103 // pred_check_branch
          %809 = sbr.rel (%p807) target = $region132
        $region131: #{tpu_custom_call.1} parent=103 // pred_region
          %811 = dma.done [#allocation12], 512
        $region132: #{tpu_custom_call.1} parent=103 // pred_fallthru
          _
        // Predicated region
        $region133: #{tpu_custom_call.1} parent=103 // pred_check
          %p812 = pneg %p377
        $region134: #{tpu_custom_call.1} parent=103 // pred_check_branch
          %814 = sbr.rel (%p812) target = $region136
        $region135: #{tpu_custom_call.1} parent=103 // pred_region
          %816 = dma.done [#allocation15], 512
        $region136: #{tpu_custom_call.1} parent=103 // pred_fallthru
          _
        // Predicated region
        $region137: #{tpu_custom_call.1} parent=103 // pred_check
          %p817 = pneg %p398
        $region138: #{tpu_custom_call.1} parent=103 // pred_check_branch
          %819 = sbr.rel (%p817) target = $region140
        $region139: #{tpu_custom_call.1} parent=103 // pred_region
          %821 = dma.done [#allocation15], 512
        $region140: #{tpu_custom_call.1} parent=103 // pred_fallthru
          _
        // Predicated region
        $region141: #{tpu_custom_call.1} parent=103 // pred_check
          %p822 = pneg %p503
        $region142: #{tpu_custom_call.1} parent=103 // pred_check_branch
          %824 = sbr.rel (%p822) target = $region144
        $region143: #{tpu_custom_call.1} parent=103 // pred_region
          %826 = dma.done [#allocation4], 16
        $region144: #{tpu_custom_call.1} parent=103 // pred_fallthru
          _
        %827 = sfence
        %s828 = smul.u32 2, %s42
        %p829 = scmp.lt.s32.totalorder %s828, 3
        %s830 = scalar_select %p829, %s828, 3
        %s831 = smul.addr %s830, 8
        %s832 = scalar_lea.vmem %s0, %s831
        %p833 = pneg %p63
        %p834 = pneg %p60
        %s835 = sand.u32 %s76, 1
        %s836 = scalar_lea.sflag [#allocation3], %s835
        %s837 = sand.u32 %s76, 1
        %s838 = smul.addr %s837, 256
        %s839 = scalar_lea.vmem [#allocation2], %s838
        %p840 = pneg %p89
        %p841 = pneg %p86
        %s842 = sand.u32 %s42, 1
        %s843 = scalar_lea.sflag [#allocation6], %s842
        %s844 = sand.u32 %s102, 1
        %s845 = smul.addr %s844, 256
        %s846 = scalar_lea.vmem [#allocation5], %s845
        %p847 = pneg %p115
        %p848 = pneg %p112
        %s849 = smul.u32 2, %s42
        %p850 = scmp.lt.s32.totalorder %s849, 3
        %s851 = scalar_select %p850, %s849, 3
        %s852 = smul.addr %s851, 8
        %s853 = scalar_lea.vmem %s3, %s852
        %p854 = pneg %p141
        %p855 = pneg %p138
        %s856 = sand.u32 %s42, 1
        %s857 = scalar_lea.sflag [#allocation6], %s856
        %s858 = sand.u32 %s154, 1
        %s859 = smul.addr %s858, 16
        %s860 = scalar_lea.vmem [#allocation7], %s859
        %p861 = pneg %p167
        %p862 = pneg %p164
        %p863 = pneg %p188
        %p864 = pneg %p185
        %p865 = pneg %p209
        %p866 = pneg %p206
        %p867 = pneg %p230
        %p868 = pneg %p227
        %p869 = pneg %p251
        %p870 = pneg %p248
        %p871 = pneg %p272
        %p872 = pneg %p269
        %p873 = pneg %p293
        %p874 = pneg %p290
        %p875 = pneg %p314
        %p876 = pneg %p311
        %p877 = pneg %p335
        %p878 = pneg %p332
        %p879 = pneg %p356
        %p880 = pneg %p353
        %p881 = pneg %p377
        %p882 = pneg %p374
        %p883 = pneg %p398
        %p884 = pneg %p395
        %p885 = pneg %p419
        %p886 = pneg %p416
        %p887 = pneg %p440
        %p888 = pneg %p437
        %p889 = pneg %p461
        %p890 = pneg %p458
        %p891 = pneg %p482
        %p892 = pneg %p479
        %p893 = pneg %p503
        %p894 = pneg %p500
        %p895 = pneg %p529
        %p896 = pneg %p526
        %s897 = smul.u32 2, %s42
        %p898 = scmp.lt.s32.totalorder %s897, 3
        %s899 = scalar_select %p898, %s897, 3
        %s900 = smul.addr %s899, 8
        %s901 = scalar_lea.vmem %s21, %s900
        %s902 = smul.u32 2, %s42
        %p903 = scmp.lt.s32.totalorder %s902, 3
        %s904 = scalar_select %p903, %s902, 3
        %s905 = smul.addr %s904, 8
        %s906 = scalar_lea.vmem %s0, %s905
        %s907 = smul.u32 2, %s42
        %s908 = smul.u32 16, %s42
        %s909 = smul.u32 16, %s42
        %s910 = smul.u32 2, %s42
        %p911 = scmp.lt.s32.totalorder %s910, 3
        %s912 = scalar_select %p911, %s910, 3
        %s913 = smul.addr %s912, 8
        %s914 = scalar_lea.vmem %s3, %s913
        %s915 = smul.u32 2, %s42
        %s916 = smul.u32 2, %s42
        %s917 = smul.u32 2, %s42
        %p918 = scmp.lt.s32.totalorder %s917, 3
        %s919 = scalar_select %p918, %s917, 3
        %s920 = smul.addr %s919, 8
        %s921 = scalar_lea.vmem %s21, %s920
        %s922 = smul.u32 2, %s42
        %v923 = vld [vmem:[%s914] sm:$0xff]
        %v924 = vld [vmem:[%s914 + $0x8] sm:$0xff]
        %v925 = vld [vmem:[%s786] sm:$0xff]
        %v926 = vld [vmem:[%s786 + $0x8] sm:$0xff]
        %v927 = vld [vmem:[%s5] sm:$0xff]
        %v928 = vld [vmem:[%s5 + $0x8] sm:$0xff]
        %v929 = vld [vmem:[%s6] sm:$0x1]
        %v931 = vperm.slane %v929, 0
        %vm933 = vcmask 130048
        %v935 = vsel %vm933, %v923, 0
        %v938 = vsel %vm933, %v924, 0
        %940 = vmatpush.msra.mxu0 0.0
        %941 = vmatpush.msra.mxu0 0.0
        %942 = vmatpush.msra.mxu0 0.0
        %943 = vmatpush.msra.mxu0 0.0
        %944 = vmatpush.msra.mxu0 0.0
        %945 = vmatpush.msra.mxu0 0.0
        %946 = vmatpush.msra.mxu0 0.0
        %947 = vmatpush.msra.mxu0 0.0
        %948 = vmatpush.msra.mxu0 0.0
        %949 = vmatpush.msra.mxu0 0.0
        %950 = vmatpush.msra.mxu0 0.0
        %951 = vmatpush.msra.mxu0 0.0
        %952 = vmatpush.msra.mxu0 0.0
        %953 = vmatpush.msra.mxu0 0.0
        %954 = vmatpush.msra.mxu0 %v928
        %955 = vmatpush.msra.mxu0 %v927
        %956 = vmatmul.f32.gmra.mxu0 %v935
        %v957 = vpop.f32.mrf.mxu0
        %v958 = vadd.f32 %v931, %v957
        %959 = vmatmul.f32.gmra.mxu0 %v938
        %v960 = vpop.f32.mrf.mxu0
        %v961 = vadd.f32 %v931, %v960
        %962 = vdwg.mxu0
        %v963 = vld [vmem:[#allocation8] sm:$0xff]
        %v964 = vld [vmem:[#allocation8 + $0x8] sm:$0xff]
        %v965 = vld [vmem:[%s8] sm:$0x1]
        %v967 = vperm.slane %v965, 0
        %969 = vrot.lane.b32.xlu0 %v923, 112
        %v970 = vpop.permute.xlu0 %969
        %971 = vrot.lane.b32.xlu0 %v924, 112
        %v972 = vpop.permute.xlu0 %971
        %v973 = vsel %vm933, %v970, 0
        %v975 = vsel %vm933, %v972, 0
        %977 = vmatpush.msra.mxu0 0.0
        %978 = vmatpush.msra.mxu0 0.0
        %979 = vmatpush.msra.mxu0 0.0
        %980 = vmatpush.msra.mxu0 0.0
        %981 = vmatpush.msra.mxu0 0.0
        %982 = vmatpush.msra.mxu0 0.0
        %983 = vmatpush.msra.mxu0 0.0
        %984 = vmatpush.msra.mxu0 0.0
        %985 = vmatpush.msra.mxu0 0.0
        %986 = vmatpush.msra.mxu0 0.0
        %987 = vmatpush.msra.mxu0 0.0
        %988 = vmatpush.msra.mxu0 0.0
        %989 = vmatpush.msra.mxu0 0.0
        %990 = vmatpush.msra.mxu0 0.0
        %991 = vmatpush.msra.mxu0 %v964
        %992 = vmatpush.msra.mxu0 %v963
        %993 = vmatmul.f32.gmra.mxu0 %v973
        %v994 = vpop.f32.mrf.mxu0
        %v995 = vadd.f32 %v967, %v994
        %996 = vmatmul.f32.gmra.mxu0 %v975
        %v997 = vpop.f32.mrf.mxu0
        %v998 = vadd.f32 %v967, %v997
        %999 = vdwg.mxu0
        %v1000 = vld [vmem:[#allocation10] sm:$0xff]
        %v1001 = vld [vmem:[#allocation10 + $0x8] sm:$0xff]
        %v1002 = vld [vmem:[%s10] sm:$0x1]
        %v1004 = vperm.slane %v1002, 0
        %v1007 = vsel %vm933, %v925, 0
        %v1010 = vsel %vm933, %v926, 0
        %1012 = vmatpush.msra.mxu0 0.0
        %1013 = vmatpush.msra.mxu0 0.0
        %1014 = vmatpush.msra.mxu0 0.0
        %1015 = vmatpush.msra.mxu0 0.0
        %1016 = vmatpush.msra.mxu0 0.0
        %1017 = vmatpush.msra.mxu0 0.0
        %1018 = vmatpush.msra.mxu0 0.0
        %1019 = vmatpush.msra.mxu0 0.0
        %1020 = vmatpush.msra.mxu0 0.0
        %1021 = vmatpush.msra.mxu0 0.0
        %1022 = vmatpush.msra.mxu0 0.0
        %1023 = vmatpush.msra.mxu0 0.0
        %1024 = vmatpush.msra.mxu0 0.0
        %1025 = vmatpush.msra.mxu0 0.0
        %1026 = vmatpush.msra.mxu0 %v1001
        %1027 = vmatpush.msra.mxu0 %v1000
        %1028 = vmatmul.f32.gmra.mxu0 %v1007
        %v1029 = vpop.f32.mrf.mxu0
        %v1030 = vadd.f32 %v1004, %v1029
        %1031 = vmatmul.f32.gmra.mxu0 %v1010
        %v1032 = vpop.f32.mrf.mxu0
        %v1033 = vadd.f32 %v1004, %v1032
        %1034 = vdwg.mxu0
        %v1035 = vld [vmem:[#allocation11] sm:$0xff]
        %v1036 = vld [vmem:[#allocation11 + $0x8] sm:$0xff]
        %v1037 = vld [vmem:[%s12] sm:$0x1]
        %v1039 = vperm.slane %v1037, 0
        %1041 = vrot.lane.b32.xlu0 %v925, 112
        %v1042 = vpop.permute.xlu0 %1041
        %1043 = vrot.lane.b32.xlu0 %v926, 112
        %v1044 = vpop.permute.xlu0 %1043
        %v1045 = vsel %vm933, %v1042, 0
        %v1047 = vsel %vm933, %v1044, 0
        %1049 = vmatpush.msra.mxu0 0.0
        %1050 = vmatpush.msra.mxu0 0.0
        %1051 = vmatpush.msra.mxu0 0.0
        %1052 = vmatpush.msra.mxu0 0.0
        %1053 = vmatpush.msra.mxu0 0.0
        %1054 = vmatpush.msra.mxu0 0.0
        %1055 = vmatpush.msra.mxu0 0.0
        %1056 = vmatpush.msra.mxu0 0.0
        %1057 = vmatpush.msra.mxu0 0.0
        %1058 = vmatpush.msra.mxu0 0.0
        %1059 = vmatpush.msra.mxu0 0.0
        %1060 = vmatpush.msra.mxu0 0.0
        %1061 = vmatpush.msra.mxu0 0.0
        %1062 = vmatpush.msra.mxu0 0.0
        %1063 = vmatpush.msra.mxu0 %v1036
        %1064 = vmatpush.msra.mxu0 %v1035
        %1065 = vmatmul.f32.gmra.mxu0 %v1045
        %v1066 = vpop.f32.mrf.mxu0
        %v1067 = vadd.f32 %v1039, %v1066
        %1068 = vmatmul.f32.gmra.mxu0 %v1047
        %v1069 = vpop.f32.mrf.mxu0
        %v1070 = vadd.f32 %v1039, %v1069
        %1071 = vdwg.mxu0
        %v1072 = vld [vmem:[#allocation13] sm:$0xff]
        %v1073 = vld [vmem:[#allocation13 + $0x8] sm:$0xff]
        %v1074 = vld [vmem:[#allocation13 + $0x10] sm:$0xff]
        %v1075 = vld [vmem:[#allocation13 + $0x18] sm:$0xff]
        %v1076 = vld [vmem:[#allocation14] sm:$0xff]
        %v1077 = vld [vmem:[#allocation14 + $0x8] sm:$0xff]
        %v1078 = vld [vmem:[#allocation14 + $0x10] sm:$0xff]
        %v1079 = vld [vmem:[#allocation14 + $0x18] sm:$0xff]
        %vm1080 = vcmask 261120
        %v1082 = vsel %vm1080, %v1067, 0
        %v1085 = vsel %vm1080, %v1070, 0
        %1087 = vmatpush.msra.mxu0 0.0
        %1088 = vmatpush.msra.mxu0 0.0
        %1089 = vmatpush.msra.mxu0 0.0
        %1090 = vmatpush.msra.mxu0 0.0
        %1091 = vmatpush.msra.mxu0 0.0
        %1092 = vmatpush.msra.mxu0 0.0
        %1093 = vmatpush.msra.mxu0 0.0
        %1094 = vmatpush.msra.mxu0 0.0
        %1095 = vmatpush.msra.mxu0 0.0
        %1096 = vmatpush.msra.mxu0 0.0
        %1097 = vmatpush.msra.mxu0 0.0
        %1098 = vmatpush.msra.mxu0 0.0
        %1099 = vmatpush.msra.mxu0 %v1079
        %1100 = vmatpush.msra.mxu0 %v1078
        %1101 = vmatpush.msra.mxu0 %v1077
        %1102 = vmatpush.msra.mxu0 %v1076
        %1103 = vmatmul.f32.gmra.mxu0 %v1082
        %v1104 = vpop.f32.mrf.mxu0
        %v1105 = vadd.f32 0.0, %v1104
        %1106 = vmatmul.f32.gmra.mxu0 %v1085
        %v1107 = vpop.f32.mrf.mxu0
        %v1108 = vadd.f32 0.0, %v1107
        %1109 = vdwg.mxu0
        %v1111 = vsel %vm1080, %v995, 0
        %v1114 = vsel %vm1080, %v998, 0
        %1116 = vmatpush.msra.mxu0 0.0
        %1117 = vmatpush.msra.mxu0 0.0
        %1118 = vmatpush.msra.mxu0 0.0
        %1119 = vmatpush.msra.mxu0 0.0
        %1120 = vmatpush.msra.mxu0 0.0
        %1121 = vmatpush.msra.mxu0 0.0
        %1122 = vmatpush.msra.mxu0 0.0
        %1123 = vmatpush.msra.mxu0 0.0
        %1124 = vmatpush.msra.mxu0 0.0
        %1125 = vmatpush.msra.mxu0 0.0
        %1126 = vmatpush.msra.mxu0 0.0
        %1127 = vmatpush.msra.mxu0 0.0
        %1128 = vmatpush.msra.mxu0 %v1075
        %1129 = vmatpush.msra.mxu0 %v1074
        %1130 = vmatpush.msra.mxu0 %v1073
        %1131 = vmatpush.msra.mxu0 %v1072
        %1132 = vmatmul.f32.gmra.mxu0 %v1111
        %v1133 = vpop.f32.mrf.mxu0
        %v1134 = vadd.f32 %v1105, %v1133
        %1135 = vmatmul.f32.gmra.mxu0 %v1114
        %v1136 = vpop.f32.mrf.mxu0
        %v1137 = vadd.f32 %v1108, %v1136
        %1138 = vdwg.mxu0
        %v1139 = vld [vmem:[%s16] sm:$0x1]
        %v1141 = vperm.slane %v1139, 0
        %v1143 = vadd.f32 %v1134, %v1141
        %v1144 = vadd.f32 %v1137, %v1141
        %v1145 = vld [vmem:[%s776] sm:$0xff]
        %v1146 = vld [vmem:[%s776 + $0x8] sm:$0xff]
        %v1147 = vld [vmem:[%s776 + $0x10] sm:$0xff]
        %v1148 = vld [vmem:[%s776 + $0x18] sm:$0xff]
        %v1149 = vld [vmem:[%s776 + $0x20] sm:$0xff]
        %v1150 = vld [vmem:[%s776 + $0x28] sm:$0xff]
        %v1151 = vld [vmem:[%s776 + $0x30] sm:$0xff]
        %v1152 = vld [vmem:[%s776 + $0x38] sm:$0xff]
        %v1153 = vld [vmem:[%s776 + $0x40] sm:$0xff]
        %v1154 = vld [vmem:[%s776 + $0x48] sm:$0xff]
        %v1155 = vld [vmem:[%s776 + $0x50] sm:$0xff]
        %v1156 = vld [vmem:[%s776 + $0x58] sm:$0xff]
        %v1157 = vld [vmem:[%s776 + $0x60] sm:$0xff]
        %v1158 = vld [vmem:[%s776 + $0x68] sm:$0xff]
        %v1159 = vld [vmem:[%s776 + $0x70] sm:$0xff]
        %v1160 = vld [vmem:[%s776 + $0x78] sm:$0xff]
        %v1161 = vld [vmem:[%s776 + $0x80] sm:$0xff]
        %v1162 = vld [vmem:[%s776 + $0x88] sm:$0xff]
        %v1163 = vld [vmem:[%s776 + $0x90] sm:$0xff]
        %v1164 = vld [vmem:[%s776 + $0x98] sm:$0xff]
        %v1165 = vld [vmem:[%s776 + $0xa0] sm:$0xff]
        %v1166 = vld [vmem:[%s776 + $0xa8] sm:$0xff]
        %v1167 = vld [vmem:[%s776 + $0xb0] sm:$0xff]
        %v1168 = vld [vmem:[%s776 + $0xb8] sm:$0xff]
        %v1169 = vld [vmem:[%s776 + $0xc0] sm:$0xff]
        %v1170 = vld [vmem:[%s776 + $0xc8] sm:$0xff]
        %v1171 = vld [vmem:[%s776 + $0xd0] sm:$0xff]
        %v1172 = vld [vmem:[%s776 + $0xd8] sm:$0xff]
        %v1173 = vld [vmem:[%s776 + $0xe0] sm:$0xff]
        %v1174 = vld [vmem:[%s776 + $0xe8] sm:$0xff]
        %v1175 = vld [vmem:[%s776 + $0xf0] sm:$0xff]
        %v1176 = vld [vmem:[%s776 + $0xf8] sm:$0xff]
        %v1177 = vld [vmem:[#allocation16] sm:$0xff]
        %v1178 = vld [vmem:[#allocation16 + $0x8] sm:$0xff]
        %v1179 = vld [vmem:[#allocation16 + $0x10] sm:$0xff]
        %v1180 = vld [vmem:[#allocation16 + $0x18] sm:$0xff]
        %v1182 = vsel %vm1080, %v1145, 0
        %v1185 = vsel %vm1080, %v1146, 0
        %v1188 = vsel %vm1080, %v1147, 0
        %v1191 = vsel %vm1080, %v1148, 0
        %v1194 = vsel %vm1080, %v1149, 0
        %v1197 = vsel %vm1080, %v1150, 0
        %v1200 = vsel %vm1080, %v1151, 0
        %v1203 = vsel %vm1080, %v1152, 0
        %v1206 = vsel %vm1080, %v1153, 0
        %v1209 = vsel %vm1080, %v1154, 0
        %v1212 = vsel %vm1080, %v1155, 0
        %v1215 = vsel %vm1080, %v1156, 0
        %v1218 = vsel %vm1080, %v1157, 0
        %v1221 = vsel %vm1080, %v1158, 0
        %v1224 = vsel %vm1080, %v1159, 0
        %v1227 = vsel %vm1080, %v1160, 0
        %v1230 = vsel %vm1080, %v1161, 0
        %v1233 = vsel %vm1080, %v1162, 0
        %v1236 = vsel %vm1080, %v1163, 0
        %v1239 = vsel %vm1080, %v1164, 0
        %v1242 = vsel %vm1080, %v1165, 0
        %v1245 = vsel %vm1080, %v1166, 0
        %v1248 = vsel %vm1080, %v1167, 0
        %v1251 = vsel %vm1080, %v1168, 0
        %v1254 = vsel %vm1080, %v1169, 0
        %v1257 = vsel %vm1080, %v1170, 0
        %v1260 = vsel %vm1080, %v1171, 0
        %v1263 = vsel %vm1080, %v1172, 0
        %v1266 = vsel %vm1080, %v1173, 0
        %v1269 = vsel %vm1080, %v1174, 0
        %v1272 = vsel %vm1080, %v1175, 0
        %v1275 = vsel %vm1080, %v1176, 0
        %1277 = vmatpush.msra.mxu0 0.0
        %1278 = vmatpush.msra.mxu0 0.0
        %1279 = vmatpush.msra.mxu0 0.0
        %1280 = vmatpush.msra.mxu0 0.0
        %1281 = vmatpush.msra.mxu0 0.0
        %1282 = vmatpush.msra.mxu0 0.0
        %1283 = vmatpush.msra.mxu0 0.0
        %1284 = vmatpush.msra.mxu0 0.0
        %1285 = vmatpush.msra.mxu0 0.0
        %1286 = vmatpush.msra.mxu0 0.0
        %1287 = vmatpush.msra.mxu0 0.0
        %1288 = vmatpush.msra.mxu0 0.0
        %1289 = vmatpush.msra.mxu0 %v1180
        %1290 = vmatpush.msra.mxu0 %v1179
        %1291 = vmatpush.msra.mxu0 %v1178
        %1292 = vmatpush.msra.mxu0 %v1177
        %1293 = vmatmul.f32.gmra.mxu0 %v1182
        %v1294 = vpop.f32.mrf.mxu0
        %v1295 = vadd.f32 0.0, %v1294
        %1296 = vmatmul.f32.gmra.mxu0 %v1185
        %v1297 = vpop.f32.mrf.mxu0
        %v1298 = vadd.f32 0.0, %v1297
        %1299 = vmatmul.f32.gmra.mxu0 %v1188
        %v1300 = vpop.f32.mrf.mxu0
        %v1301 = vadd.f32 0.0, %v1300
        %1302 = vmatmul.f32.gmra.mxu0 %v1191
        %v1303 = vpop.f32.mrf.mxu0
        %v1304 = vadd.f32 0.0, %v1303
        %1305 = vmatmul.f32.gmra.mxu0 %v1194
        %v1306 = vpop.f32.mrf.mxu0
        %v1307 = vadd.f32 0.0, %v1306
        %1308 = vmatmul.f32.gmra.mxu0 %v1197
        %v1309 = vpop.f32.mrf.mxu0
        %v1310 = vadd.f32 0.0, %v1309
        %1311 = vmatmul.f32.gmra.mxu0 %v1200
        %v1312 = vpop.f32.mrf.mxu0
        %v1313 = vadd.f32 0.0, %v1312
        %1314 = vmatmul.f32.gmra.mxu0 %v1203
        %v1315 = vpop.f32.mrf.mxu0
        %v1316 = vadd.f32 0.0, %v1315
        %1317 = vmatmul.f32.gmra.mxu0 %v1206
        %v1318 = vpop.f32.mrf.mxu0
        %v1319 = vadd.f32 0.0, %v1318
        %1320 = vmatmul.f32.gmra.mxu0 %v1209
        %v1321 = vpop.f32.mrf.mxu0
        %v1322 = vadd.f32 0.0, %v1321
        %1323 = vmatmul.f32.gmra.mxu0 %v1212
        %v1324 = vpop.f32.mrf.mxu0
        %v1325 = vadd.f32 0.0, %v1324
        %1326 = vmatmul.f32.gmra.mxu0 %v1215
        %v1327 = vpop.f32.mrf.mxu0
        %v1328 = vadd.f32 0.0, %v1327
        %1329 = vmatmul.f32.gmra.mxu0 %v1218
        %v1330 = vpop.f32.mrf.mxu0
        %v1331 = vadd.f32 0.0, %v1330
        %1332 = vmatmul.f32.gmra.mxu0 %v1221
        %v1333 = vpop.f32.mrf.mxu0
        %v1334 = vadd.f32 0.0, %v1333
        %1335 = vmatmul.f32.gmra.mxu0 %v1224
        %v1336 = vpop.f32.mrf.mxu0
        %v1337 = vadd.f32 0.0, %v1336
        %1338 = vmatmul.f32.gmra.mxu0 %v1227
        %v1339 = vpop.f32.mrf.mxu0
        %v1340 = vadd.f32 0.0, %v1339
        %1341 = vmatmul.f32.gmra.mxu0 %v1230
        %v1342 = vpop.f32.mrf.mxu0
        %v1343 = vadd.f32 0.0, %v1342
        %1344 = vmatmul.f32.gmra.mxu0 %v1233
        %v1345 = vpop.f32.mrf.mxu0
        %v1346 = vadd.f32 0.0, %v1345
        %1347 = vmatmul.f32.gmra.mxu0 %v1236
        %v1348 = vpop.f32.mrf.mxu0
        %v1349 = vadd.f32 0.0, %v1348
        %1350 = vmatmul.f32.gmra.mxu0 %v1239
        %v1351 = vpop.f32.mrf.mxu0
        %v1352 = vadd.f32 0.0, %v1351
        %1353 = vmatmul.f32.gmra.mxu0 %v1242
        %v1354 = vpop.f32.mrf.mxu0
        %v1355 = vadd.f32 0.0, %v1354
        %1356 = vmatmul.f32.gmra.mxu0 %v1245
        %v1357 = vpop.f32.mrf.mxu0
        %v1358 = vadd.f32 0.0, %v1357
        %1359 = vmatmul.f32.gmra.mxu0 %v1248
        %v1360 = vpop.f32.mrf.mxu0
        %v1361 = vadd.f32 0.0, %v1360
        %1362 = vmatmul.f32.gmra.mxu0 %v1251
        %v1363 = vpop.f32.mrf.mxu0
        %v1364 = vadd.f32 0.0, %v1363
        %1365 = vmatmul.f32.gmra.mxu0 %v1254
        %v1366 = vpop.f32.mrf.mxu0
        %v1367 = vadd.f32 0.0, %v1366
        %1368 = vmatmul.f32.gmra.mxu0 %v1257
        %v1369 = vpop.f32.mrf.mxu0
        %v1370 = vadd.f32 0.0, %v1369
        %1371 = vmatmul.f32.gmra.mxu0 %v1260
        %v1372 = vpop.f32.mrf.mxu0
        %v1373 = vadd.f32 0.0, %v1372
        %1374 = vmatmul.f32.gmra.mxu0 %v1263
        %v1375 = vpop.f32.mrf.mxu0
        %v1376 = vadd.f32 0.0, %v1375
        %1377 = vmatmul.f32.gmra.mxu0 %v1266
        %v1378 = vpop.f32.mrf.mxu0
        %v1379 = vadd.f32 0.0, %v1378
        %1380 = vmatmul.f32.gmra.mxu0 %v1269
        %v1381 = vpop.f32.mrf.mxu0
        %v1382 = vadd.f32 0.0, %v1381
        %1383 = vmatmul.f32.gmra.mxu0 %v1272
        %v1384 = vpop.f32.mrf.mxu0
        %v1385 = vadd.f32 0.0, %v1384
        %1386 = vmatmul.f32.gmra.mxu0 %v1275
        %v1387 = vpop.f32.mrf.mxu0
        %v1388 = vadd.f32 0.0, %v1387
        %1389 = vdwg.mxu0
        %v1392 = vrot.slane %v1143, 1
        %v1393 = vrot.slane %v1143, 2
        %v1394 = vrot.slane %v1143, 3
        %v1395 = vrot.slane %v1143, 4
        %v1396 = vrot.slane %v1143, 5
        %v1397 = vrot.slane %v1143, 6
        %v1398 = vrot.slane %v1143, 7
        %v1399 = vrot.slane %v1144, 1
        %v1400 = vrot.slane %v1144, 2
        %v1401 = vrot.slane %v1144, 3
        %v1402 = vrot.slane %v1144, 4
        %v1403 = vrot.slane %v1144, 5
        %v1404 = vrot.slane %v1144, 6
        %v1405 = vrot.slane %v1144, 7
        %v1406 = vperm.slane %v1143, 0
        %v1407 = vperm.slane %v1392, 0
        %v1408 = vperm.slane %v1393, 0
        %v1409 = vperm.slane %v1394, 0
        %v1410 = vperm.slane %v1395, 0
        %v1411 = vperm.slane %v1396, 0
        %v1412 = vperm.slane %v1397, 0
        %v1413 = vperm.slane %v1398, 0
        %v1414 = vperm.slane %v1144, 0
        %v1415 = vperm.slane %v1399, 0
        %v1416 = vperm.slane %v1400, 0
        %v1417 = vperm.slane %v1401, 0
        %v1418 = vperm.slane %v1402, 0
        %v1419 = vperm.slane %v1403, 0
        %v1420 = vperm.slane %v1404, 0
        %v1421 = vperm.slane %v1405, 0
        %v1438 = vadd.f32 %v1295, %v1406
        %v1439 = vadd.f32 %v1298, %v1406
        %v1440 = vadd.f32 %v1301, %v1407
        %v1441 = vadd.f32 %v1304, %v1407
        %v1442 = vadd.f32 %v1307, %v1408
        %v1443 = vadd.f32 %v1310, %v1408
        %v1444 = vadd.f32 %v1313, %v1409
        %v1445 = vadd.f32 %v1316, %v1409
        %v1446 = vadd.f32 %v1319, %v1410
        %v1447 = vadd.f32 %v1322, %v1410
        %v1448 = vadd.f32 %v1325, %v1411
        %v1449 = vadd.f32 %v1328, %v1411
        %v1450 = vadd.f32 %v1331, %v1412
        %v1451 = vadd.f32 %v1334, %v1412
        %v1452 = vadd.f32 %v1337, %v1413
        %v1453 = vadd.f32 %v1340, %v1413
        %v1454 = vadd.f32 %v1343, %v1414
        %v1455 = vadd.f32 %v1346, %v1414
        %v1456 = vadd.f32 %v1349, %v1415
        %v1457 = vadd.f32 %v1352, %v1415
        %v1458 = vadd.f32 %v1355, %v1416
        %v1459 = vadd.f32 %v1358, %v1416
        %v1460 = vadd.f32 %v1361, %v1417
        %v1461 = vadd.f32 %v1364, %v1417
        %v1462 = vadd.f32 %v1367, %v1418
        %v1463 = vadd.f32 %v1370, %v1418
        %v1464 = vadd.f32 %v1373, %v1419
        %v1465 = vadd.f32 %v1376, %v1419
        %v1466 = vadd.f32 %v1379, %v1420
        %v1467 = vadd.f32 %v1382, %v1420
        %v1468 = vadd.f32 %v1385, %v1421
        %v1469 = vadd.f32 %v1388, %v1421
        %v1470 = vmax.f32 %v1438, 0.0
        %v1471 = vmax.f32 %v1439, 0.0
        %v1472 = vmax.f32 %v1440, 0.0
        %v1473 = vmax.f32 %v1441, 0.0
        %v1474 = vmax.f32 %v1442, 0.0
        %v1475 = vmax.f32 %v1443, 0.0
        %v1476 = vmax.f32 %v1444, 0.0
        %v1477 = vmax.f32 %v1445, 0.0
        %v1478 = vmax.f32 %v1446, 0.0
        %v1479 = vmax.f32 %v1447, 0.0
        %v1480 = vmax.f32 %v1448, 0.0
        %v1481 = vmax.f32 %v1449, 0.0
        %v1482 = vmax.f32 %v1450, 0.0
        %v1483 = vmax.f32 %v1451, 0.0
        %v1484 = vmax.f32 %v1452, 0.0
        %v1485 = vmax.f32 %v1453, 0.0
        %v1486 = vmax.f32 %v1454, 0.0
        %v1487 = vmax.f32 %v1455, 0.0
        %v1488 = vmax.f32 %v1456, 0.0
        %v1489 = vmax.f32 %v1457, 0.0
        %v1490 = vmax.f32 %v1458, 0.0
        %v1491 = vmax.f32 %v1459, 0.0
        %v1492 = vmax.f32 %v1460, 0.0
        %v1493 = vmax.f32 %v1461, 0.0
        %v1494 = vmax.f32 %v1462, 0.0
        %v1495 = vmax.f32 %v1463, 0.0
        %v1496 = vmax.f32 %v1464, 0.0
        %v1497 = vmax.f32 %v1465, 0.0
        %v1498 = vmax.f32 %v1466, 0.0
        %v1499 = vmax.f32 %v1467, 0.0
        %v1500 = vmax.f32 %v1468, 0.0
        %v1501 = vmax.f32 %v1469, 0.0
        %v1502 = vld [vmem:[%s17] sm:$0x1]
        %v1504 = vperm.slane %v1502, 0
        %v1506 = vmul.f32 %v958, %v1504
        %v1507 = vmul.f32 %v961, %v1504
        %v1508 = vld [vmem:[%s18] sm:$0x1]
        %v1510 = vperm.slane %v1508, 0
        %v1512 = vmul.f32 %v1030, %v1510
        %v1513 = vmul.f32 %v1033, %v1510
        %v1514 = vadd.f32 %v1506, %v1512
        %v1515 = vadd.f32 %v1507, %v1513
        %v1516 = vld [vmem:[%s766] sm:$0xff]
        %v1517 = vld [vmem:[%s766 + $0x8] sm:$0xff]
        %v1518 = vld [vmem:[%s766 + $0x10] sm:$0xff]
        %v1519 = vld [vmem:[%s766 + $0x18] sm:$0xff]
        %v1520 = vld [vmem:[%s766 + $0x20] sm:$0xff]
        %v1521 = vld [vmem:[%s766 + $0x28] sm:$0xff]
        %v1522 = vld [vmem:[%s766 + $0x30] sm:$0xff]
        %v1523 = vld [vmem:[%s766 + $0x38] sm:$0xff]
        %v1524 = vld [vmem:[%s766 + $0x40] sm:$0xff]
        %v1525 = vld [vmem:[%s766 + $0x48] sm:$0xff]
        %v1526 = vld [vmem:[%s766 + $0x50] sm:$0xff]
        %v1527 = vld [vmem:[%s766 + $0x58] sm:$0xff]
        %v1528 = vld [vmem:[%s766 + $0x60] sm:$0xff]
        %v1529 = vld [vmem:[%s766 + $0x68] sm:$0xff]
        %v1530 = vld [vmem:[%s766 + $0x70] sm:$0xff]
        %v1531 = vld [vmem:[%s766 + $0x78] sm:$0xff]
        %v1532 = vld [vmem:[%s766 + $0x80] sm:$0xff]
        %v1533 = vld [vmem:[%s766 + $0x88] sm:$0xff]
        %v1534 = vld [vmem:[%s766 + $0x90] sm:$0xff]
        %v1535 = vld [vmem:[%s766 + $0x98] sm:$0xff]
        %v1536 = vld [vmem:[%s766 + $0xa0] sm:$0xff]
        %v1537 = vld [vmem:[%s766 + $0xa8] sm:$0xff]
        %v1538 = vld [vmem:[%s766 + $0xb0] sm:$0xff]
        %v1539 = vld [vmem:[%s766 + $0xb8] sm:$0xff]
        %v1540 = vld [vmem:[%s766 + $0xc0] sm:$0xff]
        %v1541 = vld [vmem:[%s766 + $0xc8] sm:$0xff]
        %v1542 = vld [vmem:[%s766 + $0xd0] sm:$0xff]
        %v1543 = vld [vmem:[%s766 + $0xd8] sm:$0xff]
        %v1544 = vld [vmem:[%s766 + $0xe0] sm:$0xff]
        %v1545 = vld [vmem:[%s766 + $0xe8] sm:$0xff]
        %v1546 = vld [vmem:[%s766 + $0xf0] sm:$0xff]
        %v1547 = vld [vmem:[%s766 + $0xf8] sm:$0xff]
        %v1550 = vrot.slane %v1514, 1
        %v1551 = vrot.slane %v1514, 2
        %v1552 = vrot.slane %v1514, 3
        %v1553 = vrot.slane %v1514, 4
        %v1554 = vrot.slane %v1514, 5
        %v1555 = vrot.slane %v1514, 6
        %v1556 = vrot.slane %v1514, 7
        %v1557 = vrot.slane %v1515, 1
        %v1558 = vrot.slane %v1515, 2
        %v1559 = vrot.slane %v1515, 3
        %v1560 = vrot.slane %v1515, 4
        %v1561 = vrot.slane %v1515, 5
        %v1562 = vrot.slane %v1515, 6
        %v1563 = vrot.slane %v1515, 7
        %v1564 = vperm.slane %v1514, 0
        %v1565 = vperm.slane %v1550, 0
        %v1566 = vperm.slane %v1551, 0
        %v1567 = vperm.slane %v1552, 0
        %v1568 = vperm.slane %v1553, 0
        %v1569 = vperm.slane %v1554, 0
        %v1570 = vperm.slane %v1555, 0
        %v1571 = vperm.slane %v1556, 0
        %v1572 = vperm.slane %v1515, 0
        %v1573 = vperm.slane %v1557, 0
        %v1574 = vperm.slane %v1558, 0
        %v1575 = vperm.slane %v1559, 0
        %v1576 = vperm.slane %v1560, 0
        %v1577 = vperm.slane %v1561, 0
        %v1578 = vperm.slane %v1562, 0
        %v1579 = vperm.slane %v1563, 0
        %v1596 = vmul.f32 %v1516, %v1564
        %v1597 = vmul.f32 %v1517, %v1564
        %v1598 = vmul.f32 %v1518, %v1565
        %v1599 = vmul.f32 %v1519, %v1565
        %v1600 = vmul.f32 %v1520, %v1566
        %v1601 = vmul.f32 %v1521, %v1566
        %v1602 = vmul.f32 %v1522, %v1567
        %v1603 = vmul.f32 %v1523, %v1567
        %v1604 = vmul.f32 %v1524, %v1568
        %v1605 = vmul.f32 %v1525, %v1568
        %v1606 = vmul.f32 %v1526, %v1569
        %v1607 = vmul.f32 %v1527, %v1569
        %v1608 = vmul.f32 %v1528, %v1570
        %v1609 = vmul.f32 %v1529, %v1570
        %v1610 = vmul.f32 %v1530, %v1571
        %v1611 = vmul.f32 %v1531, %v1571
        %v1612 = vmul.f32 %v1532, %v1572
        %v1613 = vmul.f32 %v1533, %v1572
        %v1614 = vmul.f32 %v1534, %v1573
        %v1615 = vmul.f32 %v1535, %v1573
        %v1616 = vmul.f32 %v1536, %v1574
        %v1617 = vmul.f32 %v1537, %v1574
        %v1618 = vmul.f32 %v1538, %v1575
        %v1619 = vmul.f32 %v1539, %v1575
        %v1620 = vmul.f32 %v1540, %v1576
        %v1621 = vmul.f32 %v1541, %v1576
        %v1622 = vmul.f32 %v1542, %v1577
        %v1623 = vmul.f32 %v1543, %v1577
        %v1624 = vmul.f32 %v1544, %v1578
        %v1625 = vmul.f32 %v1545, %v1578
        %v1626 = vmul.f32 %v1546, %v1579
        %v1627 = vmul.f32 %v1547, %v1579
        %v1628 = vsel %vm1080, %v1596, 0.0
        %1629 = vadd.xlane.f32.xlu0 %v1628
        %v1630 = vpop.xlane.xlu0 %1629
        %v1631 = vsel %vm1080, %v1597, 0.0
        %1632 = vadd.xlane.f32.xlu0 %v1631
        %v1633 = vpop.xlane.xlu0 %1632
        %v1634 = vsel %vm1080, %v1598, 0.0
        %1635 = vadd.xlane.f32.xlu0 %v1634
        %v1636 = vpop.xlane.xlu0 %1635
        %v1637 = vsel %vm1080, %v1599, 0.0
        %1638 = vadd.xlane.f32.xlu0 %v1637
        %v1639 = vpop.xlane.xlu0 %1638
        %v1640 = vsel %vm1080, %v1600, 0.0
        %1641 = vadd.xlane.f32.xlu0 %v1640
        %v1642 = vpop.xlane.xlu0 %1641
        %v1643 = vsel %vm1080, %v1601, 0.0
        %1644 = vadd.xlane.f32.xlu0 %v1643
        %v1645 = vpop.xlane.xlu0 %1644
        %v1646 = vsel %vm1080, %v1602, 0.0
        %1647 = vadd.xlane.f32.xlu0 %v1646
        %v1648 = vpop.xlane.xlu0 %1647
        %v1649 = vsel %vm1080, %v1603, 0.0
        %1650 = vadd.xlane.f32.xlu0 %v1649
        %v1651 = vpop.xlane.xlu0 %1650
        %v1652 = vsel %vm1080, %v1604, 0.0
        %1653 = vadd.xlane.f32.xlu0 %v1652
        %v1654 = vpop.xlane.xlu0 %1653
        %v1655 = vsel %vm1080, %v1605, 0.0
        %1656 = vadd.xlane.f32.xlu0 %v1655
        %v1657 = vpop.xlane.xlu0 %1656
        %v1658 = vsel %vm1080, %v1606, 0.0
        %1659 = vadd.xlane.f32.xlu0 %v1658
        %v1660 = vpop.xlane.xlu0 %1659
        %v1661 = vsel %vm1080, %v1607, 0.0
        %1662 = vadd.xlane.f32.xlu0 %v1661
        %v1663 = vpop.xlane.xlu0 %1662
        %v1664 = vsel %vm1080, %v1608, 0.0
        %1665 = vadd.xlane.f32.xlu0 %v1664
        %v1666 = vpop.xlane.xlu0 %1665
        %v1667 = vsel %vm1080, %v1609, 0.0
        %1668 = vadd.xlane.f32.xlu0 %v1667
        %v1669 = vpop.xlane.xlu0 %1668
        %v1670 = vsel %vm1080, %v1610, 0.0
        %1671 = vadd.xlane.f32.xlu0 %v1670
        %v1672 = vpop.xlane.xlu0 %1671
        %v1673 = vsel %vm1080, %v1611, 0.0
        %1674 = vadd.xlane.f32.xlu0 %v1673
        %v1675 = vpop.xlane.xlu0 %1674
        %v1676 = vsel %vm1080, %v1612, 0.0
        %1677 = vadd.xlane.f32.xlu0 %v1676
        %v1678 = vpop.xlane.xlu0 %1677
        %v1679 = vsel %vm1080, %v1613, 0.0
        %1680 = vadd.xlane.f32.xlu0 %v1679
        %v1681 = vpop.xlane.xlu0 %1680
        %v1682 = vsel %vm1080, %v1614, 0.0
        %1683 = vadd.xlane.f32.xlu0 %v1682
        %v1684 = vpop.xlane.xlu0 %1683
        %v1685 = vsel %vm1080, %v1615, 0.0
        %1686 = vadd.xlane.f32.xlu0 %v1685
        %v1687 = vpop.xlane.xlu0 %1686
        %v1688 = vsel %vm1080, %v1616, 0.0
        %1689 = vadd.xlane.f32.xlu0 %v1688
        %v1690 = vpop.xlane.xlu0 %1689
        %v1691 = vsel %vm1080, %v1617, 0.0
        %1692 = vadd.xlane.f32.xlu0 %v1691
        %v1693 = vpop.xlane.xlu0 %1692
        %v1694 = vsel %vm1080, %v1618, 0.0
        %1695 = vadd.xlane.f32.xlu0 %v1694
        %v1696 = vpop.xlane.xlu0 %1695
        %v1697 = vsel %vm1080, %v1619, 0.0
        %1698 = vadd.xlane.f32.xlu0 %v1697
        %v1699 = vpop.xlane.xlu0 %1698
        %v1700 = vsel %vm1080, %v1620, 0.0
        %1701 = vadd.xlane.f32.xlu0 %v1700
        %v1702 = vpop.xlane.xlu0 %1701
        %v1703 = vsel %vm1080, %v1621, 0.0
        %1704 = vadd.xlane.f32.xlu0 %v1703
        %v1705 = vpop.xlane.xlu0 %1704
        %v1706 = vsel %vm1080, %v1622, 0.0
        %1707 = vadd.xlane.f32.xlu0 %v1706
        %v1708 = vpop.xlane.xlu0 %1707
        %v1709 = vsel %vm1080, %v1623, 0.0
        %1710 = vadd.xlane.f32.xlu0 %v1709
        %v1711 = vpop.xlane.xlu0 %1710
        %v1712 = vsel %vm1080, %v1624, 0.0
        %1713 = vadd.xlane.f32.xlu0 %v1712
        %v1714 = vpop.xlane.xlu0 %1713
        %v1715 = vsel %vm1080, %v1625, 0.0
        %1716 = vadd.xlane.f32.xlu0 %v1715
        %v1717 = vpop.xlane.xlu0 %1716
        %v1718 = vsel %vm1080, %v1626, 0.0
        %1719 = vadd.xlane.f32.xlu0 %v1718
        %v1720 = vpop.xlane.xlu0 %1719
        %v1721 = vsel %vm1080, %v1627, 0.0
        %1722 = vadd.xlane.f32.xlu0 %v1721
        %v1723 = vpop.xlane.xlu0 %1722
        %v1724 = vld [vmem:[%s19] sm:$0x1]
        %v1726 = vperm.slane %v1724, 0
        %v1728 = vmul.f32 %v1470, %v1726
        %v1729 = vmul.f32 %v1471, %v1726
        %v1730 = vmul.f32 %v1472, %v1726
        %v1731 = vmul.f32 %v1473, %v1726
        %v1732 = vmul.f32 %v1474, %v1726
        %v1733 = vmul.f32 %v1475, %v1726
        %v1734 = vmul.f32 %v1476, %v1726
        %v1735 = vmul.f32 %v1477, %v1726
        %v1736 = vmul.f32 %v1478, %v1726
        %v1737 = vmul.f32 %v1479, %v1726
        %v1738 = vmul.f32 %v1480, %v1726
        %v1739 = vmul.f32 %v1481, %v1726
        %v1740 = vmul.f32 %v1482, %v1726
        %v1741 = vmul.f32 %v1483, %v1726
        %v1742 = vmul.f32 %v1484, %v1726
        %v1743 = vmul.f32 %v1485, %v1726
        %v1744 = vmul.f32 %v1486, %v1726
        %v1745 = vmul.f32 %v1487, %v1726
        %v1746 = vmul.f32 %v1488, %v1726
        %v1747 = vmul.f32 %v1489, %v1726
        %v1748 = vmul.f32 %v1490, %v1726
        %v1749 = vmul.f32 %v1491, %v1726
        %v1750 = vmul.f32 %v1492, %v1726
        %v1751 = vmul.f32 %v1493, %v1726
        %v1752 = vmul.f32 %v1494, %v1726
        %v1753 = vmul.f32 %v1495, %v1726
        %v1754 = vmul.f32 %v1496, %v1726
        %v1755 = vmul.f32 %v1497, %v1726
        %v1756 = vmul.f32 %v1498, %v1726
        %v1757 = vmul.f32 %v1499, %v1726
        %v1758 = vmul.f32 %v1500, %v1726
        %v1759 = vmul.f32 %v1501, %v1726
        %vm1760 = vcmask 523264
        %v1761 = vsel %vm1760, %v1728, 0.0
        %1762 = vadd.xlane.f32.xlu0 %v1761
        %v1763 = vpop.xlane.xlu0 %1762
        %v1764 = vsel %vm1760, %v1729, 0.0
        %1765 = vadd.xlane.f32.xlu0 %v1764
        %v1766 = vpop.xlane.xlu0 %1765
        %v1767 = vsel %vm1760, %v1730, 0.0
        %1768 = vadd.xlane.f32.xlu0 %v1767
        %v1769 = vpop.xlane.xlu0 %1768
        %v1770 = vsel %vm1760, %v1731, 0.0
        %1771 = vadd.xlane.f32.xlu0 %v1770
        %v1772 = vpop.xlane.xlu0 %1771
        %v1773 = vsel %vm1760, %v1732, 0.0
        %1774 = vadd.xlane.f32.xlu0 %v1773
        %v1775 = vpop.xlane.xlu0 %1774
        %v1776 = vsel %vm1760, %v1733, 0.0
        %1777 = vadd.xlane.f32.xlu0 %v1776
        %v1778 = vpop.xlane.xlu0 %1777
        %v1779 = vsel %vm1760, %v1734, 0.0
        %1780 = vadd.xlane.f32.xlu0 %v1779
        %v1781 = vpop.xlane.xlu0 %1780
        %v1782 = vsel %vm1760, %v1735, 0.0
        %1783 = vadd.xlane.f32.xlu0 %v1782
        %v1784 = vpop.xlane.xlu0 %1783
        %v1785 = vsel %vm1760, %v1736, 0.0
        %1786 = vadd.xlane.f32.xlu0 %v1785
        %v1787 = vpop.xlane.xlu0 %1786
        %v1788 = vsel %vm1760, %v1737, 0.0
        %1789 = vadd.xlane.f32.xlu0 %v1788
        %v1790 = vpop.xlane.xlu0 %1789
        %v1791 = vsel %vm1760, %v1738, 0.0
        %1792 = vadd.xlane.f32.xlu0 %v1791
        %v1793 = vpop.xlane.xlu0 %1792
        %v1794 = vsel %vm1760, %v1739, 0.0
        %1795 = vadd.xlane.f32.xlu0 %v1794
        %v1796 = vpop.xlane.xlu0 %1795
        %v1797 = vsel %vm1760, %v1740, 0.0
        %1798 = vadd.xlane.f32.xlu0 %v1797
        %v1799 = vpop.xlane.xlu0 %1798
        %v1800 = vsel %vm1760, %v1741, 0.0
        %1801 = vadd.xlane.f32.xlu0 %v1800
        %v1802 = vpop.xlane.xlu0 %1801
        %v1803 = vsel %vm1760, %v1742, 0.0
        %1804 = vadd.xlane.f32.xlu0 %v1803
        %v1805 = vpop.xlane.xlu0 %1804
        %v1806 = vsel %vm1760, %v1743, 0.0
        %1807 = vadd.xlane.f32.xlu0 %v1806
        %v1808 = vpop.xlane.xlu0 %1807
        %v1809 = vsel %vm1760, %v1744, 0.0
        %1810 = vadd.xlane.f32.xlu0 %v1809
        %v1811 = vpop.xlane.xlu0 %1810
        %v1812 = vsel %vm1760, %v1745, 0.0
        %1813 = vadd.xlane.f32.xlu0 %v1812
        %v1814 = vpop.xlane.xlu0 %1813
        %v1815 = vsel %vm1760, %v1746, 0.0
        %1816 = vadd.xlane.f32.xlu0 %v1815
        %v1817 = vpop.xlane.xlu0 %1816
        %v1818 = vsel %vm1760, %v1747, 0.0
        %1819 = vadd.xlane.f32.xlu0 %v1818
        %v1820 = vpop.xlane.xlu0 %1819
        %v1821 = vsel %vm1760, %v1748, 0.0
        %1822 = vadd.xlane.f32.xlu0 %v1821
        %v1823 = vpop.xlane.xlu0 %1822
        %v1824 = vsel %vm1760, %v1749, 0.0
        %1825 = vadd.xlane.f32.xlu0 %v1824
        %v1826 = vpop.xlane.xlu0 %1825
        %v1827 = vsel %vm1760, %v1750, 0.0
        %1828 = vadd.xlane.f32.xlu0 %v1827
        %v1829 = vpop.xlane.xlu0 %1828
        %v1830 = vsel %vm1760, %v1751, 0.0
        %1831 = vadd.xlane.f32.xlu0 %v1830
        %v1832 = vpop.xlane.xlu0 %1831
        %v1833 = vsel %vm1760, %v1752, 0.0
        %1834 = vadd.xlane.f32.xlu0 %v1833
        %v1835 = vpop.xlane.xlu0 %1834
        %v1836 = vsel %vm1760, %v1753, 0.0
        %1837 = vadd.xlane.f32.xlu0 %v1836
        %v1838 = vpop.xlane.xlu0 %1837
        %v1839 = vsel %vm1760, %v1754, 0.0
        %1840 = vadd.xlane.f32.xlu0 %v1839
        %v1841 = vpop.xlane.xlu0 %1840
        %v1842 = vsel %vm1760, %v1755, 0.0
        %1843 = vadd.xlane.f32.xlu0 %v1842
        %v1844 = vpop.xlane.xlu0 %1843
        %v1845 = vsel %vm1760, %v1756, 0.0
        %1846 = vadd.xlane.f32.xlu0 %v1845
        %v1847 = vpop.xlane.xlu0 %1846
        %v1848 = vsel %vm1760, %v1757, 0.0
        %1849 = vadd.xlane.f32.xlu0 %v1848
        %v1850 = vpop.xlane.xlu0 %1849
        %v1851 = vsel %vm1760, %v1758, 0.0
        %1852 = vadd.xlane.f32.xlu0 %v1851
        %v1853 = vpop.xlane.xlu0 %1852
        %v1854 = vsel %vm1760, %v1759, 0.0
        %1855 = vadd.xlane.f32.xlu0 %v1854
        %v1856 = vpop.xlane.xlu0 %1855
        %s1857 = sld [smem:[#allocation17]]
        %s1858 = sld [smem:[#allocation17 + $0x1]]
        %v1859 = vld [vmem:[%s906] sm:$0xff]
        %v1860 = vld [vmem:[%s906 + $0x8] sm:$0xff]
        %v1861 = vstv %s1857
        %v1862 = vmul.f32 %v1861, %v1859
        %v1863 = vmul.f32 %v1861, %v1860
        %v1896 = vlaneseq
        %v1897 = vand.u32 %v1896, 127
        %v1898 = vperm.slane %v1630, %v1897
        %v1899 = vadd.s32 %v1897, 4294967288
        %v1900 = vperm.slane %v1633, %v1899
        %vm1901 = vcmask 130112
        %v1902 = vsel %vm1901, %v1900, %v1898
        %v1903 = vperm.slane %v1636, %v1897
        %v1904 = vperm.slane %v1639, %v1899
        %v1905 = vsel %vm1901, %v1904, %v1903
        %v1906 = vperm.slane %v1642, %v1897
        %v1907 = vperm.slane %v1645, %v1899
        %v1908 = vsel %vm1901, %v1907, %v1906
        %v1909 = vperm.slane %v1648, %v1897
        %v1910 = vperm.slane %v1651, %v1899
        %v1911 = vsel %vm1901, %v1910, %v1909
        %v1912 = vperm.slane %v1654, %v1897
        %v1913 = vperm.slane %v1657, %v1899
        %v1914 = vsel %vm1901, %v1913, %v1912
        %v1915 = vperm.slane %v1660, %v1897
        %v1916 = vperm.slane %v1663, %v1899
        %v1917 = vsel %vm1901, %v1916, %v1915
        %v1918 = vperm.slane %v1666, %v1897
        %v1919 = vperm.slane %v1669, %v1899
        %v1920 = vsel %vm1901, %v1919, %v1918
        %v1921 = vperm.slane %v1672, %v1897
        %v1922 = vperm.slane %v1675, %v1899
        %v1923 = vsel %vm1901, %v1922, %v1921
        %v1924 = vperm.slane %v1678, %v1897
        %v1925 = vperm.slane %v1681, %v1899
        %v1926 = vsel %vm1901, %v1925, %v1924
        %v1927 = vperm.slane %v1684, %v1897
        %v1928 = vperm.slane %v1687, %v1899
        %v1929 = vsel %vm1901, %v1928, %v1927
        %v1930 = vperm.slane %v1690, %v1897
        %v1931 = vperm.slane %v1693, %v1899
        %v1932 = vsel %vm1901, %v1931, %v1930
        %v1933 = vperm.slane %v1696, %v1897
        %v1934 = vperm.slane %v1699, %v1899
        %v1935 = vsel %vm1901, %v1934, %v1933
        %v1936 = vperm.slane %v1702, %v1897
        %v1937 = vperm.slane %v1705, %v1899
        %v1938 = vsel %vm1901, %v1937, %v1936
        %v1939 = vperm.slane %v1708, %v1897
        %v1940 = vperm.slane %v1711, %v1899
        %v1941 = vsel %vm1901, %v1940, %v1939
        %v1942 = vperm.slane %v1714, %v1897
        %v1943 = vperm.slane %v1717, %v1899
        %v1944 = vsel %vm1901, %v1943, %v1942
        %v1945 = vperm.slane %v1720, %v1897
        %v1946 = vperm.slane %v1723, %v1899
        %v1947 = vsel %vm1901, %v1946, %v1945
        %vm1948 = vcmask 1041409
        %v1949 = vsel %vm1948, %v1905, %v1902
        %vm1950 = vcmask 1042434
        %v1951 = vsel %vm1950, %v1908, %v1949
        %vm1952 = vcmask 1043459
        %v1953 = vsel %vm1952, %v1911, %v1951
        %vm1954 = vcmask 1044484
        %v1955 = vsel %vm1954, %v1914, %v1953
        %vm1956 = vcmask 1045509
        %v1957 = vsel %vm1956, %v1917, %v1955
        %vm1958 = vcmask 1046534
        %v1959 = vsel %vm1958, %v1920, %v1957
        %vm1960 = vcmask 1047559
        %v1961 = vsel %vm1960, %v1923, %v1959
        %v1962 = vsel %vm1948, %v1929, %v1926
        %v1963 = vsel %vm1950, %v1932, %v1962
        %v1964 = vsel %vm1952, %v1935, %v1963
        %v1965 = vsel %vm1954, %v1938, %v1964
        %v1966 = vsel %vm1956, %v1941, %v1965
        %v1967 = vsel %vm1958, %v1944, %v1966
        %v1968 = vsel %vm1960, %v1947, %v1967
        %v1971 = vadd.f32 %v1862, %v1961
        %v1972 = vadd.f32 %v1863, %v1968
        %v2005 = vperm.slane %v1763, %v1897
        %v2006 = vperm.slane %v1766, %v1899
        %v2007 = vsel %vm1901, %v2006, %v2005
        %v2008 = vperm.slane %v1769, %v1897
        %v2009 = vperm.slane %v1772, %v1899
        %v2010 = vsel %vm1901, %v2009, %v2008
        %v2011 = vperm.slane %v1775, %v1897
        %v2012 = vperm.slane %v1778, %v1899
        %v2013 = vsel %vm1901, %v2012, %v2011
        %v2014 = vperm.slane %v1781, %v1897
        %v2015 = vperm.slane %v1784, %v1899
        %v2016 = vsel %vm1901, %v2015, %v2014
        %v2017 = vperm.slane %v1787, %v1897
        %v2018 = vperm.slane %v1790, %v1899
        %v2019 = vsel %vm1901, %v2018, %v2017
        %v2020 = vperm.slane %v1793, %v1897
        %v2021 = vperm.slane %v1796, %v1899
        %v2022 = vsel %vm1901, %v2021, %v2020
        %v2023 = vperm.slane %v1799, %v1897
        %v2024 = vperm.slane %v1802, %v1899
        %v2025 = vsel %vm1901, %v2024, %v2023
        %v2026 = vperm.slane %v1805, %v1897
        %v2027 = vperm.slane %v1808, %v1899
        %v2028 = vsel %vm1901, %v2027, %v2026
        %v2029 = vperm.slane %v1811, %v1897
        %v2030 = vperm.slane %v1814, %v1899
        %v2031 = vsel %vm1901, %v2030, %v2029
        %v2032 = vperm.slane %v1817, %v1897
        %v2033 = vperm.slane %v1820, %v1899
        %v2034 = vsel %vm1901, %v2033, %v2032
        %v2035 = vperm.slane %v1823, %v1897
        %v2036 = vperm.slane %v1826, %v1899
        %v2037 = vsel %vm1901, %v2036, %v2035
        %v2038 = vperm.slane %v1829, %v1897
        %v2039 = vperm.slane %v1832, %v1899
        %v2040 = vsel %vm1901, %v2039, %v2038
        %v2041 = vperm.slane %v1835, %v1897
        %v2042 = vperm.slane %v1838, %v1899
        %v2043 = vsel %vm1901, %v2042, %v2041
        %v2044 = vperm.slane %v1841, %v1897
        %v2045 = vperm.slane %v1844, %v1899
        %v2046 = vsel %vm1901, %v2045, %v2044
        %v2047 = vperm.slane %v1847, %v1897
        %v2048 = vperm.slane %v1850, %v1899
        %v2049 = vsel %vm1901, %v2048, %v2047
        %v2050 = vperm.slane %v1853, %v1897
        %v2051 = vperm.slane %v1856, %v1899
        %v2052 = vsel %vm1901, %v2051, %v2050
        %v2053 = vsel %vm1948, %v2010, %v2007
        %v2054 = vsel %vm1950, %v2013, %v2053
        %v2055 = vsel %vm1952, %v2016, %v2054
        %v2056 = vsel %vm1954, %v2019, %v2055
        %v2057 = vsel %vm1956, %v2022, %v2056
        %v2058 = vsel %vm1958, %v2025, %v2057
        %v2059 = vsel %vm1960, %v2028, %v2058
        %v2060 = vsel %vm1948, %v2034, %v2031
        %v2061 = vsel %vm1950, %v2037, %v2060
        %v2062 = vsel %vm1952, %v2040, %v2061
        %v2063 = vsel %vm1954, %v2043, %v2062
        %v2064 = vsel %vm1956, %v2046, %v2063
        %v2065 = vsel %vm1958, %v2049, %v2064
        %v2066 = vsel %vm1960, %v2052, %v2065
        %v2069 = vadd.f32 %v1971, %v2059
        %v2070 = vadd.f32 %v1972, %v2066
        %v2071 = vstv %s1858
        %v2072 = vadd.f32 %v2069, %v2071
        %v2073 = vadd.f32 %v2070, %v2071
        %2074 = vst.msk [vmem:[%s921] sm:$0xff] %vm933, %v2072
        %2075 = vst.msk [vmem:[%s921 + $0x8] sm:$0xff] %vm933, %v2073
        %s2076 = smul.u32 2, %s42
        %p2077 = scmp.lt.s32.totalorder %s2076, 3
        %s2078 = scalar_select %p2077, %s2076, 3
        %s2079 = smul.addr %s2078, 8
        %s2080 = scalar_lea.vmem %s21, %s2079
        // Predicated region
        $region145: #{tpu_custom_call.1} parent=103 // pred_check
          %p2081 = pneg %p526
        $region146: #{tpu_custom_call.1} parent=103 // pred_check_branch
          %2083 = sbr.rel (%p2081) target = $region148
        $region147: #{tpu_custom_call.1} parent=103 // pred_region
          %s2084 = smul.u32 2, %s42
        $region148: #{tpu_custom_call.1} parent=103 // pred_fallthru
          _
      $region104: #{tpu_custom_call.1} parent=5 // pred_fallthru
        _
      %p2085 = scmp.le.s32.totalorder 2, %s37
      // Predicated region
      $region149: #{tpu_custom_call.1} parent=5 // pred_check
        %p2086 = pneg %p2085
      $region150: #{tpu_custom_call.1} parent=5 // pred_check_branch
        %2088 = sbr.rel (%p2086) target = $region152
      $region151: #{tpu_custom_call.1} parent=5 // pred_region
        %s2089 = ssub.s32 %s37, 2
        // Predicated region
        $region153: #{tpu_custom_call.1} parent=151 // pred_check
          %p2090 = pneg %p532
        $region154: #{tpu_custom_call.1} parent=151 // pred_check_branch
          %2092 = sbr.rel (%p2090) target = $region156
        $region155: #{tpu_custom_call.1} parent=151 // pred_region
          %s2093 = smul.u32 2, %s43
          %p2094 = scmp.lt.s32.totalorder %s2093, 3
          %s2095 = scalar_select %p2094, %s2093, 3
          %s2096 = smul.addr %s2095, 8
          %s2097 = scalar_lea.vmem %s21, %s2096
        $region156: #{tpu_custom_call.1} parent=151 // pred_fallthru
          _
      $region152: #{tpu_custom_call.1} parent=5 // pred_fallthru
        _
    $region6: #{tpu_custom_call.1} parent=1 // loop_footer
      %s41 = sadd.s32 1, %s37
    $region7: #{tpu_custom_call.1} parent=1 // loop_footer_branch
      %36 = sbr.rel target = $region3
    $region8: #{tpu_custom_call.1} parent=1 // loop_exit
      _
    %2098 = vsyncpa [#allocation3], 1
    %s2099 = scalar_lea.sflag [#allocation3], 1
    %2100 = vsyncpa %s2099, 1
    %2101 = vsyncpa [#allocation6], 1
    %s2102 = scalar_lea.sflag [#allocation6], 1
    %2103 = vsyncpa %s2102, 1
    %2104 = vsyncpa [#allocation9], 1
    %2105 = vsyncpa [#allocation12], 1
    %2106 = vsyncpa [#allocation15], 1
    %2107 = vsyncpa [#allocation4], 1
    %s2108 = scalar_lea.sflag [#allocation4], 1
    %2109 = vsyncpa %s2108, 1

</llo_original>
